<compile_context>
chip_gen: v7x
topology: tpu7x:2x2x1
jax: 0.10.0
libtpu: 0.0.40
codegen_flags: <defaults>
</compile_context>

<pallas_src>
import jax
import jax.numpy as jnp
import numpy as np
from jax import lax
from jax.experimental import pallas as pl
from jax.experimental.pallas import tpu as pltpu

EMBED_DIM = 64
NUM_HEADS = 4
HEAD_DIM = EMBED_DIM // NUM_HEADS
SCALING = HEAD_DIM ** (-0.5)
SEQ_LEN = 64
BATCH = 1
Q_BLOCKS = 2                       # >= 2 parallel grid points (v7x megacore)
LQ = SEQ_LEN // Q_BLOCKS           # query rows per grid step

# scores[i, j] = sum_d q[i, d] * k[j, d]  (contract head_dim, no k transpose)
_QK_DIMNUMS = (((1,), (1,)), ((), ()))


def _mha_kernel(k_ref, v_ref, q_ref, mask_ref, w_ref, b_ref, o_ref):
    # Packed params: w_ref (4, E, E) bf16 = [WkT, WvT, WqT*scale, WoT],
    #                b_ref (4, E)   f32  = [bk,  bv,  bq*scale,  bo].
    b_all = b_ref[...]                       # (4, E) f32, one tiny load
    bk = b_all[0:1, :]
    bv = b_all[1:2, :]
    bq = b_all[2:3, :]
    bo = b_all[3:4, :]

    k_in = k_ref[...]                        # (L,  E) bf16 (full sequence)
    v_in = v_ref[...]                        # (L,  E) bf16
    q_in = q_ref[...]                        # (LQ, E) bf16 (this q block)

    # Input projections: bf16 MXU operands, f32 accumulation, f32 bias add,
    # then back to bf16 for the attention matmuls.
    k = (jnp.dot(k_in, w_ref[0], preferred_element_type=jnp.float32)
         + bk).astype(jnp.bfloat16)
    v = (jnp.dot(v_in, w_ref[1], preferred_element_type=jnp.float32)
         + bv).astype(jnp.bfloat16)
    q = (jnp.dot(q_in, w_ref[2], preferred_element_type=jnp.float32)
         + bq).astype(jnp.bfloat16)          # scaling pre-folded into W/b

    mask_add = mask_ref[...]                 # (LQ, L) f32: -1e30 masked, 0 else

    # Per-head attention; heads concatenated once, then a single K=E output
    # projection GEMM (instead of 4 K=16 GEMMs + 4 full-width accumulates).
    heads = []
    for h in range(NUM_HEADS):
        lo = h * HEAD_DIM
        hi = lo + HEAD_DIM
        qh = q[:, lo:hi]                                   # (LQ, hd)
        kh = k[:, lo:hi]                                   # (L,  hd)
        vh = v[:, lo:hi]                                   # (L,  hd)

        scores = lax.dot_general(qh, kh, _QK_DIMNUMS,
                                 preferred_element_type=jnp.float32)  # (LQ, L)
        scores = scores + mask_add

        # softmax over keys (f32)
        m = jnp.max(scores, axis=-1, keepdims=True)
        p = jnp.exp(scores - m)
        denom = jnp.sum(p, axis=-1, keepdims=True)
        attn_w = (p * pl.reciprocal(denom, approx=True)).astype(jnp.bfloat16)

        # dropout(p=0.0, eval) == identity -> skipped.
        heads.append(jnp.dot(attn_w, vh,
                             preferred_element_type=jnp.float32))     # (LQ, hd)

    attn_out = jnp.concatenate(heads, axis=-1).astype(jnp.bfloat16)   # (LQ, E)
    out = jnp.dot(attn_out, w_ref[3], preferred_element_type=jnp.float32) + bo
    o_ref[...] = out.astype(o_ref.dtype)


@jax.jit
def multihead_attention(k, v, q, attn_mask, params):
    """k, v, q: (bs, l, E) f32;  attn_mask: (l, l), nonzero = masked."""
    bs, l, e = k.shape
    wk, bk, wv, bv, wq, bq, wo, bo = params

    # Host-side prep (one-time XLA ops, outside the kernel's hot loop):
    #   * pre-transpose weights, fold SCALING into the q projection,
    #   * pack weights -> (4, E, E) bf16 and biases -> (4, E) f32,
    #   * additive -1e30 mask, bf16 input copies.
    w_pack = jnp.stack(
        [wk.T, wv.T, wq.T * SCALING, wo.T], axis=0).astype(jnp.bfloat16)
    b_pack = jnp.stack(
        [bk, bv, bq * SCALING, bo], axis=0).astype(jnp.float32)
    mask_add = jnp.where(attn_mask > 0.0,
                         jnp.float32(-1e30), jnp.float32(0.0))
    k_bf = k.astype(jnp.bfloat16)
    v_bf = v.astype(jnp.bfloat16)
    q_bf = q.astype(jnp.bfloat16)

    lq = l // Q_BLOCKS

    kv_spec = pl.BlockSpec((pl.Squeezed(), l, e), lambda b, i: (b, 0, 0))
    q_spec = pl.BlockSpec((pl.Squeezed(), lq, e), lambda b, i: (b, i, 0))
    mask_spec = pl.BlockSpec((lq, l), lambda b, i: (i, 0))
    w_spec = pl.BlockSpec((4, e, e), lambda b, i: (0, 0, 0))
    b_spec = pl.BlockSpec((4, e), lambda b, i: (0, 0))
    out_spec = pl.BlockSpec((pl.Squeezed(), lq, e), lambda b, i: (b, i, 0))

    return pl.pallas_call(
        _mha_kernel,
        out_shape=jax.ShapeDtypeStruct((bs, l, e), jnp.float32),
        grid_spec=pltpu.PrefetchScalarGridSpec(
            num_scalar_prefetch=0,
            grid=(bs, Q_BLOCKS),
            in_specs=[
                kv_spec,        # k (full sequence)
                kv_spec,        # v (full sequence)
                q_spec,         # q (query block)
                mask_spec,      # additive mask block
                w_spec,         # packed pre-transposed weights (4, E, E) bf16
                b_spec,         # packed biases (4, E) f32
            ],
            out_specs=out_spec,
        ),
        # Both grid axes are independent -> shard across the two TensorCores
        # on v7x; harmless on v5e/v6e.
        compiler_params=pltpu.CompilerParams(
            dimension_semantics=("parallel", "parallel")),
    )(k_bf, v_bf, q_bf, mask_add, w_pack, b_pack)


def reference_mha(k, v, q, attn_mask, params):
    """Pure-JAX f32 reference mirroring the PyTorch forward."""
    wk, bk, wv, bv, wq, bq, wo, bo = params
    bs, l, e = k.shape
    k = k @ wk.T + bk
    v = v @ wv.T + bv
    q = (q @ wq.T + bq) * SCALING

    def split(x):  # (bs, l, E) -> (bs, H, l, hd)
        return x.reshape(bs, l, NUM_HEADS, HEAD_DIM).transpose(0, 2, 1, 3)

    qh, kh, vh = split(q), split(k), split(v)
    scores = jnp.einsum("bhqd,bhkd->bhqk", qh, kh)
    scores = jnp.where(attn_mask[None, None] > 0.0, -jnp.inf, scores)
    w = jax.nn.softmax(scores, axis=-1)
    out = jnp.einsum("bhqk,bhkd->bhqd", w, vh)
    out = out.transpose(0, 2, 1, 3).reshape(bs, l, e)
    return out @ wo.T + bo


def init_params(key):
    keys = jax.random.split(key, 8)
    scale = 1.0 / np.sqrt(EMBED_DIM)
    wk = jax.random.normal(keys[0], (EMBED_DIM, EMBED_DIM), jnp.float32) * scale
    bk = jax.random.normal(keys[1], (EMBED_DIM,), jnp.float32) * scale
    wv = jax.random.normal(keys[2], (EMBED_DIM, EMBED_DIM), jnp.float32) * scale
    bv = jax.random.normal(keys[3], (EMBED_DIM,), jnp.float32) * scale
    wq = jax.random.normal(keys[4], (EMBED_DIM, EMBED_DIM), jnp.float32) * scale
    bq = jax.random.normal(keys[5], (EMBED_DIM,), jnp.float32) * scale
    wo = jax.random.normal(keys[6], (EMBED_DIM, EMBED_DIM), jnp.float32) * scale
    bo = jax.random.normal(keys[7], (EMBED_DIM,), jnp.float32) * scale
    return (wk, bk, wv, bv, wq, bq, wo, bo)


if __name__ == "__main__":
    root = jax.random.PRNGKey(0)
    kq, kk, kv, kp = jax.random.split(root, 4)

    q = jax.random.normal(kq, (BATCH, SEQ_LEN, EMBED_DIM), jnp.float32)
    k = jax.random.normal(kk, (BATCH, SEQ_LEN, EMBED_DIM), jnp.float32)
    v = jax.random.normal(kv, (BATCH, SEQ_LEN, EMBED_DIM), jnp.float32)
    params = init_params(kp)

    # attn_mask analogous to the reference script (first key column masked);
    # kept (l, l) so it broadcasts over (bs, heads, l, l).
    attn_mask = jnp.concatenate(
        [jnp.ones((SEQ_LEN, 1), jnp.float32),
         jnp.zeros((SEQ_LEN, SEQ_LEN - 1), jnp.float32)], axis=1)

    out = multihead_attention(k, v, q, attn_mask, params)
    out = jax.block_until_ready(out)

    ref = reference_mha(k, v, q, attn_mask, params)
    # Tolerance accommodates bf16 MXU operands + the EUP approximate
    # reciprocal in the softmax (softmax / reductions themselves stay f32).
    np.testing.assert_allclose(np.asarray(out), np.asarray(ref),
                               rtol=3e-2, atol=3e-2)
    print("KERNEL_OK")
</pallas_src>

<mosaic_0001>
module attributes {stable_mosaic.version = 11 : i64} {
  func.func @_mha_kernel(%arg0: i32, %arg1: i32, %arg2: memref<1x64x64xbf16, #tpu.memory_space<vmem>>, %arg3: memref<1x64x64xbf16, #tpu.memory_space<vmem>>, %arg4: memref<1x32x64xbf16, #tpu.memory_space<vmem>>, %arg5: memref<32x64xf32, #tpu.memory_space<vmem>>, %arg6: memref<4x64x64xbf16, #tpu.memory_space<vmem>>, %arg7: memref<4x64xf32, #tpu.memory_space<vmem>>, %arg8: memref<1x32x64xf32, #tpu.memory_space<vmem>>) attributes {dimension_semantics = [#tpu.dimension_semantics<parallel>, #tpu.dimension_semantics<parallel>], iteration_bounds = array<i64: 1, 2>, scalar_prefetch = 0 : i64, scratch_operands = 0 : i64, tpu.core_type = #tpu.core_type<tc>, window_params = [{transform_indices = @transform_0, window_bounds = array<i64: 1, 64, 64>}, {transform_indices = @transform_1, window_bounds = array<i64: 1, 64, 64>}, {transform_indices = @transform_2, window_bounds = array<i64: 1, 32, 64>}, {transform_indices = @transform_3, window_bounds = array<i64: 32, 64>}, {pipeline_mode = #tpu.pipeline_mode<synchronous>, transform_indices = @transform_4, window_bounds = array<i64: 4, 64, 64>}, {pipeline_mode = #tpu.pipeline_mode<synchronous>, transform_indices = @transform_5, window_bounds = array<i64: 4, 64>}, {transform_indices = @transform_6, window_bounds = array<i64: 1, 32, 64>}]} {
    %c0 = arith.constant 0 : index
    %c0_0 = arith.constant 0 : index
    %0 = vector.load %arg7[%c0, %c0_0] : memref<4x64xf32, #tpu.memory_space<vmem>>, vector<4x64xf32>
    %1 = vector.extract_strided_slice %0 {offsets = [0, 0], sizes = [1, 64], strides = [1, 1]} : vector<4x64xf32> to vector<1x64xf32>
    %2 = vector.extract_strided_slice %0 {offsets = [1, 0], sizes = [1, 64], strides = [1, 1]} : vector<4x64xf32> to vector<1x64xf32>
    %3 = vector.extract_strided_slice %0 {offsets = [2, 0], sizes = [1, 64], strides = [1, 1]} : vector<4x64xf32> to vector<1x64xf32>
    %4 = vector.extract_strided_slice %0 {offsets = [3, 0], sizes = [1, 64], strides = [1, 1]} : vector<4x64xf32> to vector<1x64xf32>
    %c0_1 = arith.constant 0 : index
    %c0_2 = arith.constant 0 : index
    %c0_3 = arith.constant 0 : index
    %5 = vector.load %arg2[%c0_1, %c0_2, %c0_3] : memref<1x64x64xbf16, #tpu.memory_space<vmem>>, vector<1x64x64xbf16>
    %6 = vector.shape_cast %5 : vector<1x64x64xbf16> to vector<64x64xbf16>
    %c0_4 = arith.constant 0 : index
    %c0_5 = arith.constant 0 : index
    %c0_6 = arith.constant 0 : index
    %7 = vector.load %arg3[%c0_4, %c0_5, %c0_6] : memref<1x64x64xbf16, #tpu.memory_space<vmem>>, vector<1x64x64xbf16>
    %8 = vector.shape_cast %7 : vector<1x64x64xbf16> to vector<64x64xbf16>
    %c0_7 = arith.constant 0 : index
    %c0_8 = arith.constant 0 : index
    %c0_9 = arith.constant 0 : index
    %9 = vector.load %arg4[%c0_7, %c0_8, %c0_9] : memref<1x32x64xbf16, #tpu.memory_space<vmem>>, vector<1x32x64xbf16>
    %10 = vector.shape_cast %9 : vector<1x32x64xbf16> to vector<32x64xbf16>
    %c0_10 = arith.constant 0 : index
    %c0_11 = arith.constant 0 : index
    %c0_12 = arith.constant 0 : index
    %11 = vector.load %arg6[%c0_10, %c0_11, %c0_12] : memref<4x64x64xbf16, #tpu.memory_space<vmem>>, vector<1x64x64xbf16>
    %12 = vector.shape_cast %11 : vector<1x64x64xbf16> to vector<64x64xbf16>
    %cst = arith.constant dense<0.000000e+00> : vector<64x64xf32>
    %13 = tpu.matmul %6, %12, %cst {dimension_numbers = #tpu.dot_dimension_numbers<[1], [0], [0], [1], [0, 0, 1, 1], [], []>} : vector<64x64xbf16>, vector<64x64xbf16>, vector<64x64xf32> -> vector<64x64xf32>
    %14 = vector.broadcast %1 : vector<1x64xf32> to vector<64x64xf32>
    %15 = arith.addf %13, %14 : vector<64x64xf32>
    %16 = arith.truncf %15 : vector<64x64xf32> to vector<64x64xbf16>
    %c1 = arith.constant 1 : index
    %c0_13 = arith.constant 0 : index
    %c0_14 = arith.constant 0 : index
    %17 = vector.load %arg6[%c1, %c0_13, %c0_14] : memref<4x64x64xbf16, #tpu.memory_space<vmem>>, vector<1x64x64xbf16>
    %18 = vector.shape_cast %17 : vector<1x64x64xbf16> to vector<64x64xbf16>
    %cst_15 = arith.constant dense<0.000000e+00> : vector<64x64xf32>
    %19 = tpu.matmul %8, %18, %cst_15 {dimension_numbers = #tpu.dot_dimension_numbers<[1], [0], [0], [1], [0, 0, 1, 1], [], []>} : vector<64x64xbf16>, vector<64x64xbf16>, vector<64x64xf32> -> vector<64x64xf32>
    %20 = vector.broadcast %2 : vector<1x64xf32> to vector<64x64xf32>
    %21 = arith.addf %19, %20 : vector<64x64xf32>
    %22 = arith.truncf %21 : vector<64x64xf32> to vector<64x64xbf16>
    %c2 = arith.constant 2 : index
    %c0_16 = arith.constant 0 : index
    %c0_17 = arith.constant 0 : index
    %23 = vector.load %arg6[%c2, %c0_16, %c0_17] : memref<4x64x64xbf16, #tpu.memory_space<vmem>>, vector<1x64x64xbf16>
    %24 = vector.shape_cast %23 : vector<1x64x64xbf16> to vector<64x64xbf16>
    %cst_18 = arith.constant dense<0.000000e+00> : vector<32x64xf32>
    %25 = tpu.matmul %10, %24, %cst_18 {dimension_numbers = #tpu.dot_dimension_numbers<[1], [0], [0], [1], [0, 0, 1, 1], [], []>} : vector<32x64xbf16>, vector<64x64xbf16>, vector<32x64xf32> -> vector<32x64xf32>
    %26 = vector.broadcast %3 : vector<1x64xf32> to vector<32x64xf32>
    %27 = arith.addf %25, %26 : vector<32x64xf32>
    %28 = arith.truncf %27 : vector<32x64xf32> to vector<32x64xbf16>
    %c0_19 = arith.constant 0 : index
    %c0_20 = arith.constant 0 : index
    %29 = vector.load %arg5[%c0_19, %c0_20] : memref<32x64xf32, #tpu.memory_space<vmem>>, vector<32x64xf32>
    %30 = vector.extract_strided_slice %28 {offsets = [0, 0], sizes = [32, 16], strides = [1, 1]} : vector<32x64xbf16> to vector<32x16xbf16>
    %31 = vector.extract_strided_slice %16 {offsets = [0, 0], sizes = [64, 16], strides = [1, 1]} : vector<64x64xbf16> to vector<64x16xbf16>
    %32 = vector.extract_strided_slice %22 {offsets = [0, 0], sizes = [64, 16], strides = [1, 1]} : vector<64x64xbf16> to vector<64x16xbf16>
    %cst_21 = arith.constant dense<0.000000e+00> : vector<32x64xf32>
    %33 = tpu.matmul %30, %31, %cst_21 {dimension_numbers = #tpu.dot_dimension_numbers<[1], [1], [0], [0], [0, 0, 1, 0], [], []>} : vector<32x16xbf16>, vector<64x16xbf16>, vector<32x64xf32> -> vector<32x64xf32>
    %34 = arith.addf %33, %29 : vector<32x64xf32>
    %cst_22 = arith.constant dense<0xFF800000> : vector<32xf32>
    %35 = vector.multi_reduction <maximumf>, %34, %cst_22 [1] : vector<32x64xf32> to vector<32xf32>
    %36 = vector.shape_cast %35 : vector<32xf32> to vector<32x1xf32>
    %37 = vector.broadcast %36 : vector<32x1xf32> to vector<32x64xf32>
    %38 = arith.subf %34, %37 : vector<32x64xf32>
    %39 = math.exp %38 : vector<32x64xf32>
    %cst_23 = arith.constant dense<0.000000e+00> : vector<32xf32>
    %40 = vector.multi_reduction <add>, %39, %cst_23 [1] : vector<32x64xf32> to vector<32xf32>
    %41 = vector.shape_cast %40 : vector<32xf32> to vector<32x1xf32>
    %42 = tpu.reciprocal %41 {approx = true} : vector<32x1xf32> -> vector<32x1xf32>
    %43 = vector.broadcast %42 : vector<32x1xf32> to vector<32x64xf32>
    %44 = arith.mulf %39, %43 : vector<32x64xf32>
    %45 = arith.truncf %44 : vector<32x64xf32> to vector<32x64xbf16>
    %cst_24 = arith.constant dense<0.000000e+00> : vector<32x16xf32>
    %46 = tpu.matmul %45, %32, %cst_24 {dimension_numbers = #tpu.dot_dimension_numbers<[1], [0], [0], [1], [0, 0, 1, 1], [], []>} : vector<32x64xbf16>, vector<64x16xbf16>, vector<32x16xf32> -> vector<32x16xf32>
    %47 = vector.extract_strided_slice %28 {offsets = [0, 16], sizes = [32, 16], strides = [1, 1]} : vector<32x64xbf16> to vector<32x16xbf16>
    %48 = vector.extract_strided_slice %16 {offsets = [0, 16], sizes = [64, 16], strides = [1, 1]} : vector<64x64xbf16> to vector<64x16xbf16>
    %49 = vector.extract_strided_slice %22 {offsets = [0, 16], sizes = [64, 16], strides = [1, 1]} : vector<64x64xbf16> to vector<64x16xbf16>
    %cst_25 = arith.constant dense<0.000000e+00> : vector<32x64xf32>
    %50 = tpu.matmul %47, %48, %cst_25 {dimension_numbers = #tpu.dot_dimension_numbers<[1], [1], [0], [0], [0, 0, 1, 0], [], []>} : vector<32x16xbf16>, vector<64x16xbf16>, vector<32x64xf32> -> vector<32x64xf32>
    %51 = arith.addf %50, %29 : vector<32x64xf32>
    %cst_26 = arith.constant dense<0xFF800000> : vector<32xf32>
    %52 = vector.multi_reduction <maximumf>, %51, %cst_26 [1] : vector<32x64xf32> to vector<32xf32>
    %53 = vector.shape_cast %52 : vector<32xf32> to vector<32x1xf32>
    %54 = vector.broadcast %53 : vector<32x1xf32> to vector<32x64xf32>
    %55 = arith.subf %51, %54 : vector<32x64xf32>
    %56 = math.exp %55 : vector<32x64xf32>
    %cst_27 = arith.constant dense<0.000000e+00> : vector<32xf32>
    %57 = vector.multi_reduction <add>, %56, %cst_27 [1] : vector<32x64xf32> to vector<32xf32>
    %58 = vector.shape_cast %57 : vector<32xf32> to vector<32x1xf32>
    %59 = tpu.reciprocal %58 {approx = true} : vector<32x1xf32> -> vector<32x1xf32>
    %60 = vector.broadcast %59 : vector<32x1xf32> to vector<32x64xf32>
    %61 = arith.mulf %56, %60 : vector<32x64xf32>
    %62 = arith.truncf %61 : vector<32x64xf32> to vector<32x64xbf16>
    %cst_28 = arith.constant dense<0.000000e+00> : vector<32x16xf32>
    %63 = tpu.matmul %62, %49, %cst_28 {dimension_numbers = #tpu.dot_dimension_numbers<[1], [0], [0], [1], [0, 0, 1, 1], [], []>} : vector<32x64xbf16>, vector<64x16xbf16>, vector<32x16xf32> -> vector<32x16xf32>
    %64 = vector.extract_strided_slice %28 {offsets = [0, 32], sizes = [32, 16], strides = [1, 1]} : vector<32x64xbf16> to vector<32x16xbf16>
    %65 = vector.extract_strided_slice %16 {offsets = [0, 32], sizes = [64, 16], strides = [1, 1]} : vector<64x64xbf16> to vector<64x16xbf16>
    %66 = vector.extract_strided_slice %22 {offsets = [0, 32], sizes = [64, 16], strides = [1, 1]} : vector<64x64xbf16> to vector<64x16xbf16>
    %cst_29 = arith.constant dense<0.000000e+00> : vector<32x64xf32>
    %67 = tpu.matmul %64, %65, %cst_29 {dimension_numbers = #tpu.dot_dimension_numbers<[1], [1], [0], [0], [0, 0, 1, 0], [], []>} : vector<32x16xbf16>, vector<64x16xbf16>, vector<32x64xf32> -> vector<32x64xf32>
    %68 = arith.addf %67, %29 : vector<32x64xf32>
    %cst_30 = arith.constant dense<0xFF800000> : vector<32xf32>
    %69 = vector.multi_reduction <maximumf>, %68, %cst_30 [1] : vector<32x64xf32> to vector<32xf32>
    %70 = vector.shape_cast %69 : vector<32xf32> to vector<32x1xf32>
    %71 = vector.broadcast %70 : vector<32x1xf32> to vector<32x64xf32>
    %72 = arith.subf %68, %71 : vector<32x64xf32>
    %73 = math.exp %72 : vector<32x64xf32>
    %cst_31 = arith.constant dense<0.000000e+00> : vector<32xf32>
    %74 = vector.multi_reduction <add>, %73, %cst_31 [1] : vector<32x64xf32> to vector<32xf32>
    %75 = vector.shape_cast %74 : vector<32xf32> to vector<32x1xf32>
    %76 = tpu.reciprocal %75 {approx = true} : vector<32x1xf32> -> vector<32x1xf32>
    %77 = vector.broadcast %76 : vector<32x1xf32> to vector<32x64xf32>
    %78 = arith.mulf %73, %77 : vector<32x64xf32>
    %79 = arith.truncf %78 : vector<32x64xf32> to vector<32x64xbf16>
    %cst_32 = arith.constant dense<0.000000e+00> : vector<32x16xf32>
    %80 = tpu.matmul %79, %66, %cst_32 {dimension_numbers = #tpu.dot_dimension_numbers<[1], [0], [0], [1], [0, 0, 1, 1], [], []>} : vector<32x64xbf16>, vector<64x16xbf16>, vector<32x16xf32> -> vector<32x16xf32>
    %81 = vector.extract_strided_slice %28 {offsets = [0, 48], sizes = [32, 16], strides = [1, 1]} : vector<32x64xbf16> to vector<32x16xbf16>
    %82 = vector.extract_strided_slice %16 {offsets = [0, 48], sizes = [64, 16], strides = [1, 1]} : vector<64x64xbf16> to vector<64x16xbf16>
    %83 = vector.extract_strided_slice %22 {offsets = [0, 48], sizes = [64, 16], strides = [1, 1]} : vector<64x64xbf16> to vector<64x16xbf16>
    %cst_33 = arith.constant dense<0.000000e+00> : vector<32x64xf32>
    %84 = tpu.matmul %81, %82, %cst_33 {dimension_numbers = #tpu.dot_dimension_numbers<[1], [1], [0], [0], [0, 0, 1, 0], [], []>} : vector<32x16xbf16>, vector<64x16xbf16>, vector<32x64xf32> -> vector<32x64xf32>
    %85 = arith.addf %84, %29 : vector<32x64xf32>
    %cst_34 = arith.constant dense<0xFF800000> : vector<32xf32>
    %86 = vector.multi_reduction <maximumf>, %85, %cst_34 [1] : vector<32x64xf32> to vector<32xf32>
    %87 = vector.shape_cast %86 : vector<32xf32> to vector<32x1xf32>
    %88 = vector.broadcast %87 : vector<32x1xf32> to vector<32x64xf32>
    %89 = arith.subf %85, %88 : vector<32x64xf32>
    %90 = math.exp %89 : vector<32x64xf32>
    %cst_35 = arith.constant dense<0.000000e+00> : vector<32xf32>
    %91 = vector.multi_reduction <add>, %90, %cst_35 [1] : vector<32x64xf32> to vector<32xf32>
    %92 = vector.shape_cast %91 : vector<32xf32> to vector<32x1xf32>
    %93 = tpu.reciprocal %92 {approx = true} : vector<32x1xf32> -> vector<32x1xf32>
    %94 = vector.broadcast %93 : vector<32x1xf32> to vector<32x64xf32>
    %95 = arith.mulf %90, %94 : vector<32x64xf32>
    %96 = arith.truncf %95 : vector<32x64xf32> to vector<32x64xbf16>
    %cst_36 = arith.constant dense<0.000000e+00> : vector<32x16xf32>
    %97 = tpu.matmul %96, %83, %cst_36 {dimension_numbers = #tpu.dot_dimension_numbers<[1], [0], [0], [1], [0, 0, 1, 1], [], []>} : vector<32x64xbf16>, vector<64x16xbf16>, vector<32x16xf32> -> vector<32x16xf32>
    %98 = tpu.concatenate %46, %63, %80, %97 in 1 : vector<32x16xf32>, vector<32x16xf32>, vector<32x16xf32>, vector<32x16xf32> -> vector<32x64xf32>
    %99 = arith.truncf %98 : vector<32x64xf32> to vector<32x64xbf16>
    %c3 = arith.constant 3 : index
    %c0_37 = arith.constant 0 : index
    %c0_38 = arith.constant 0 : index
    %100 = vector.load %arg6[%c3, %c0_37, %c0_38] : memref<4x64x64xbf16, #tpu.memory_space<vmem>>, vector<1x64x64xbf16>
    %101 = vector.shape_cast %100 : vector<1x64x64xbf16> to vector<64x64xbf16>
    %cst_39 = arith.constant dense<0.000000e+00> : vector<32x64xf32>
    %102 = tpu.matmul %99, %101, %cst_39 {dimension_numbers = #tpu.dot_dimension_numbers<[1], [0], [0], [1], [0, 0, 1, 1], [], []>} : vector<32x64xbf16>, vector<64x64xbf16>, vector<32x64xf32> -> vector<32x64xf32>
    %103 = vector.broadcast %4 : vector<1x64xf32> to vector<32x64xf32>
    %104 = arith.addf %102, %103 : vector<32x64xf32>
    %c0_40 = arith.constant 0 : index
    %c0_41 = arith.constant 0 : index
    %c0_42 = arith.constant 0 : index
    %105 = vector.load %arg8[%c0_40, %c0_41, %c0_42] : memref<1x32x64xf32, #tpu.memory_space<vmem>>, vector<1x32x64xf32>
    %106 = vector.shape_cast %105 : vector<1x32x64xf32> to vector<32x64xf32>
    %107 = vector.shape_cast %104 : vector<32x64xf32> to vector<1x32x64xf32>
    tpu.vector_store %arg8[%c0_40, %c0_41, %c0_42], %107 {strides = array<i32>} : memref<1x32x64xf32, #tpu.memory_space<vmem>>, vector<1x32x64xf32>,
    return
  }
  func.func @transform_0(%arg0: i32, %arg1: i32) -> (i32, i32, i32) {
    %c0_i32 = arith.constant 0 : i32
    %c0_i32_0 = arith.constant 0 : i32
    %c0_i32_1 = arith.constant 0 : i32
    return %arg0, %c0_i32, %c0_i32_0 : i32, i32, i32
  }
  func.func @transform_1(%arg0: i32, %arg1: i32) -> (i32, i32, i32) {
    %c0_i32 = arith.constant 0 : i32
    %c0_i32_0 = arith.constant 0 : i32
    %c0_i32_1 = arith.constant 0 : i32
    return %arg0, %c0_i32, %c0_i32_0 : i32, i32, i32
  }
  func.func @transform_2(%arg0: i32, %arg1: i32) -> (i32, i32, i32) {
    %c0_i32 = arith.constant 0 : i32
    %c0_i32_0 = arith.constant 0 : i32
    return %arg0, %arg1, %c0_i32 : i32, i32, i32
  }
  func.func @transform_3(%arg0: i32, %arg1: i32) -> (i32, i32) {
    %c0_i32 = arith.constant 0 : i32
    %c0_i32_0 = arith.constant 0 : i32
    return %arg1, %c0_i32 : i32, i32
  }
  func.func @transform_4(%arg0: i32, %arg1: i32) -> (i32, i32, i32) {
    %c0_i32 = arith.constant 0 : i32
    %c0_i32_0 = arith.constant 0 : i32
    %c0_i32_1 = arith.constant 0 : i32
    %c0_i32_2 = arith.constant 0 : i32
    return %c0_i32, %c0_i32_0, %c0_i32_1 : i32, i32, i32
  }
  func.func @transform_5(%arg0: i32, %arg1: i32) -> (i32, i32) {
    %c0_i32 = arith.constant 0 : i32
    %c0_i32_0 = arith.constant 0 : i32
    %c0_i32_1 = arith.constant 0 : i32
    return %c0_i32, %c0_i32_0 : i32, i32
  }
  func.func @transform_6(%arg0: i32, %arg1: i32) -> (i32, i32, i32) {
    %c0_i32 = arith.constant 0 : i32
    %c0_i32_0 = arith.constant 0 : i32
    return %arg0, %arg1, %c0_i32 : i32, i32, i32
  }
}

</mosaic_0001>

<llo_original>
// kernel: multihead_attention.1
$region0: #{multihead_attention.1}
  #allocation0 [shape = 'u32[]', space=smem, size = 0x4, offset = 0x4, fixed_abs, tag = 'smem constant byte address 0x4 - core index']
  #allocation1 [shape = 'u32[144,128]{1,0:T(1,128)}', space=vmem, size = 0x12000, scoped, tag = 'internal scratch']
  %s0 = inlined_call_operand.vmem [shape: bf16[1,64,64], index: 0, kind: input, shape index: {}]
  %s1 = inlined_call_operand.vmem [shape: bf16[1,64,64], index: 1, kind: input, shape index: {}]
  %s2 = inlined_call_operand.vmem [shape: bf16[1,64,64], index: 2, kind: input, shape index: {}]
  %s3 = inlined_call_operand.vmem [shape: f32[64,64], index: 3, kind: input, shape index: {}]
  %s4 = inlined_call_operand.vmem [shape: bf16[4,64,64], index: 4, kind: input, shape index: {}]
  %s5 = inlined_call_operand.vmem [shape: f32[4,64], index: 5, kind: input, shape index: {}]
  %s6 = inlined_call_operand.hbm [shape: f32[1,64,64], index: 6, kind: output, shape index: {}]
  %s7 = sld [smem:[#allocation0]]
  $region57: #{multihead_attention.1} parent=0
    _
  %s9 = ssub.s32 1, %s7
  %s10 = scalar_select 0, %s9, %s7
  $region1: #{multihead_attention.1} parent=0
    #allocation2 [shape = 'u8[32768]{0}', space=vmem, size = 0x8000, scoped, tag = 'output window, operand 0']
    #allocation3 [shape = 's32[2]{0}', space=sflag, size = 0x8, scoped, tag = 'scoped memory for multihead_attention.1']
    %11 = vsyncpa [#allocation3], 0
    %s12 = scalar_lea.sflag [#allocation3], 1
    %13 = vsyncpa %s12, 0
    loop: start=0, step=1, limit=4
    $region2: #{multihead_attention.1} parent=1 // loop_pre_header
      _
    $region3: #{multihead_attention.1} parent=1 // loop_header
      %s15 = sphi 0, %s19
      %p16 = scmp.ge.s32.totalorder %s15, 4
      %s22 = sphi 0, %s34
      %s23 = sphi 0, %s30
      %s24 = sphi 0, %s22
      %s25 = sphi 0, %s23
      %s26 = sphi 0, %s24
      %s27 = sphi 0, %s25
      %s37 = sphi 0, %s39
      %s40 = sphi 0, %s37
      %s41 = sphi 0, %s40
      %s57 = sphi 0, %s41
      %s63 = sphi 0, %s65
      %s66 = sphi 0, %s63
      %s67 = sphi 0, %s66
      %s83 = sphi 0, %s67
      %s91 = sphi 0, %s93
      %s94 = sphi 0, %s91
      %s95 = sphi 0, %s94
      %s111 = sphi 0, %s95
      %s117 = sphi 0, %s119
      %s120 = sphi 0, %s117
      %s121 = sphi 0, %s120
      %s137 = sphi 0, %s121
      %s141 = sphi 0, %s141
      %s143 = sphi 0, %s141
      %s144 = sphi 0, %s143
      %s158 = sphi 0, %s144
      %s162 = sphi 0, %s162
      %s164 = sphi 0, %s162
      %s165 = sphi 0, %s164
      %s179 = sphi 0, %s165
      %s187 = sphi 0, %s189
      %s190 = sphi 0, %s187
      %s191 = sphi 0, %s190
      %s207 = sphi 0, %s191
    $region4: #{multihead_attention.1} parent=1 // loop_header_branch
      %18 = sbr.rel (%p16) target = $region8
    $region5: #{multihead_attention.1} parent=1 // loop_body
      %s20 = ssub.s32 %s15, 1
      %s21 = ssub.s32 %s15, 2
      %s28 = sadd.s32 1, %s23
      %p29 = scmp.ge.s32.totalorder %s28, 2
      %s30 = scalar_select %p29, 0, %s28
      %s31 = sadd.s32 1, %s22
      %s32 = scalar_select %p29, %s31, %s22
      %p33 = scmp.ge.s32.totalorder %s32, 1
      %s34 = scalar_select %p33, 0, %s32
      %s35 = ssub.s32 %s22, %s34
      %p36 = scmp.eq.s32.totalorder %s35, 0
      %s38 = sadd.s32 %s37, 1
      %s39 = scalar_select %p36, %s37, %s38
      %p42 = pneg %p36
      %p43 = scmp.eq.s32.totalorder %s15, 1
      %p44 = por %p42, %p43
      %p45 = scmp.ne.s32.totalorder %s37, %s40
      %p46 = scmp.eq.s32.totalorder %s15, 0
      %p47 = por %p45, %p46
      %p48 = scmp.ne.s32.totalorder %s37, %s40
      %p49 = scmp.eq.s32.totalorder %s20, 1
      %p50 = por %p48, %p49
      %p51 = scmp.ne.s32.totalorder %s40, %s41
      %p52 = scmp.eq.s32.totalorder %s20, 0
      %p53 = por %p51, %p52
      %p54 = scmp.ne.s32.totalorder %s40, %s41
      %p55 = scmp.eq.s32.totalorder %s21, 1
      %p56 = por %p54, %p55
      %p58 = scmp.ne.s32.totalorder %s41, %s57
      %p59 = scmp.eq.s32.totalorder %s21, 0
      %p60 = por %p58, %p59
      %s61 = ssub.s32 %s22, %s34
      %p62 = scmp.eq.s32.totalorder %s61, 0
      %s64 = sadd.s32 %s63, 1
      %s65 = scalar_select %p62, %s63, %s64
      %p68 = pneg %p62
      %p69 = scmp.eq.s32.totalorder %s15, 1
      %p70 = por %p68, %p69
      %p71 = scmp.ne.s32.totalorder %s63, %s66
      %p72 = scmp.eq.s32.totalorder %s15, 0
      %p73 = por %p71, %p72
      %p74 = scmp.ne.s32.totalorder %s63, %s66
      %p75 = scmp.eq.s32.totalorder %s20, 1
      %p76 = por %p74, %p75
      %p77 = scmp.ne.s32.totalorder %s66, %s67
      %p78 = scmp.eq.s32.totalorder %s20, 0
      %p79 = por %p77, %p78
      %p80 = scmp.ne.s32.totalorder %s66, %s67
      %p81 = scmp.eq.s32.totalorder %s21, 1
      %p82 = por %p80, %p81
      %p84 = scmp.ne.s32.totalorder %s67, %s83
      %p85 = scmp.eq.s32.totalorder %s21, 0
      %p86 = por %p84, %p85
      %s87 = ssub.s32 %s22, %s34
      %s88 = ssub.s32 %s23, %s30
      %s89 = sor.u32 %s87, %s88
      %p90 = scmp.eq.s32.totalorder %s89, 0
      %s92 = sadd.s32 %s91, 1
      %s93 = scalar_select %p90, %s91, %s92
      %p96 = pneg %p90
      %p97 = scmp.eq.s32.totalorder %s15, 1
      %p98 = por %p96, %p97
      %p99 = scmp.ne.s32.totalorder %s91, %s94
      %p100 = scmp.eq.s32.totalorder %s15, 0
      %p101 = por %p99, %p100
      %p102 = scmp.ne.s32.totalorder %s91, %s94
      %p103 = scmp.eq.s32.totalorder %s20, 1
      %p104 = por %p102, %p103
      %p105 = scmp.ne.s32.totalorder %s94, %s95
      %p106 = scmp.eq.s32.totalorder %s20, 0
      %p107 = por %p105, %p106
      %p108 = scmp.ne.s32.totalorder %s94, %s95
      %p109 = scmp.eq.s32.totalorder %s21, 1
      %p110 = por %p108, %p109
      %p112 = scmp.ne.s32.totalorder %s95, %s111
      %p113 = scmp.eq.s32.totalorder %s21, 0
      %p114 = por %p112, %p113
      %s115 = ssub.s32 %s23, %s30
      %p116 = scmp.eq.s32.totalorder %s115, 0
      %s118 = sadd.s32 %s117, 1
      %s119 = scalar_select %p116, %s117, %s118
      %p122 = pneg %p116
      %p123 = scmp.eq.s32.totalorder %s15, 1
      %p124 = por %p122, %p123
      %p125 = scmp.ne.s32.totalorder %s117, %s120
      %p126 = scmp.eq.s32.totalorder %s15, 0
      %p127 = por %p125, %p126
      %p128 = scmp.ne.s32.totalorder %s117, %s120
      %p129 = scmp.eq.s32.totalorder %s20, 1
      %p130 = por %p128, %p129
      %p131 = scmp.ne.s32.totalorder %s120, %s121
      %p132 = scmp.eq.s32.totalorder %s20, 0
      %p133 = por %p131, %p132
      %p134 = scmp.ne.s32.totalorder %s120, %s121
      %p135 = scmp.eq.s32.totalorder %s21, 1
      %p136 = por %p134, %p135
      %p138 = scmp.ne.s32.totalorder %s121, %s137
      %p139 = scmp.eq.s32.totalorder %s21, 0
      %p140 = por %p138, %p139
      %s142 = sadd.s32 %s141, 1
      %p145 = scmp.eq.s32.totalorder %s15, 1
      %p146 = scmp.ne.s32.totalorder %s141, %s143
      %p147 = scmp.eq.s32.totalorder %s15, 0
      %p148 = por %p146, %p147
      %p149 = scmp.ne.s32.totalorder %s141, %s143
      %p150 = scmp.eq.s32.totalorder %s20, 1
      %p151 = por %p149, %p150
      %p152 = scmp.ne.s32.totalorder %s143, %s144
      %p153 = scmp.eq.s32.totalorder %s20, 0
      %p154 = por %p152, %p153
      %p155 = scmp.ne.s32.totalorder %s143, %s144
      %p156 = scmp.eq.s32.totalorder %s21, 1
      %p157 = por %p155, %p156
      %p159 = scmp.ne.s32.totalorder %s144, %s158
      %p160 = scmp.eq.s32.totalorder %s21, 0
      %p161 = por %p159, %p160
      %s163 = sadd.s32 %s162, 1
      %p166 = scmp.eq.s32.totalorder %s15, 1
      %p167 = scmp.ne.s32.totalorder %s162, %s164
      %p168 = scmp.eq.s32.totalorder %s15, 0
      %p169 = por %p167, %p168
      %p170 = scmp.ne.s32.totalorder %s162, %s164
      %p171 = scmp.eq.s32.totalorder %s20, 1
      %p172 = por %p170, %p171
      %p173 = scmp.ne.s32.totalorder %s164, %s165
      %p174 = scmp.eq.s32.totalorder %s20, 0
      %p175 = por %p173, %p174
      %p176 = scmp.ne.s32.totalorder %s164, %s165
      %p177 = scmp.eq.s32.totalorder %s21, 1
      %p178 = por %p176, %p177
      %p180 = scmp.ne.s32.totalorder %s165, %s179
      %p181 = scmp.eq.s32.totalorder %s21, 0
      %p182 = por %p180, %p181
      %s183 = ssub.s32 %s22, %s34
      %s184 = ssub.s32 %s23, %s30
      %s185 = sor.u32 %s183, %s184
      %p186 = scmp.eq.s32.totalorder %s185, 0
      %s188 = sadd.s32 %s187, 1
      %s189 = scalar_select %p186, %s187, %s188
      %p192 = pneg %p186
      %p193 = scmp.eq.s32.totalorder %s15, 1
      %p194 = por %p192, %p193
      %p195 = scmp.ne.s32.totalorder %s187, %s190
      %p196 = scmp.eq.s32.totalorder %s15, 0
      %p197 = por %p195, %p196
      %p198 = scmp.ne.s32.totalorder %s187, %s190
      %p199 = scmp.eq.s32.totalorder %s20, 1
      %p200 = por %p198, %p199
      %p201 = scmp.ne.s32.totalorder %s190, %s191
      %p202 = scmp.eq.s32.totalorder %s20, 0
      %p203 = por %p201, %p202
      %p204 = scmp.ne.s32.totalorder %s190, %s191
      %p205 = scmp.eq.s32.totalorder %s21, 1
      %p206 = por %p204, %p205
      %p208 = scmp.ne.s32.totalorder %s191, %s207
      %p209 = scmp.eq.s32.totalorder %s21, 0
      %p210 = por %p208, %p209
      %p211 = scmp.le.s32.totalorder 1, %s15
      %p212 = scmp.lt.s32.totalorder %s15, 3
      %p213 = pnand %p211, %p212
      %p214 = pneg %p213
      // Predicated region
      $region9: #{multihead_attention.1} parent=5 // pred_check
        _
      $region10: #{multihead_attention.1} parent=5 // pred_check_branch
        %216 = sbr.rel (%p213) target = $region12
      $region11: #{multihead_attention.1} parent=5 // pred_region
        %s217 = ssub.s32 %s15, 1
        // Predicated region
        $region13: #{multihead_attention.1} parent=11 // pred_check
          %p218 = pneg %p53
        $region14: #{multihead_attention.1} parent=11 // pred_check_branch
          %220 = sbr.rel (%p218) target = $region16
        $region15: #{multihead_attention.1} parent=11 // pred_region
          %p221 = scmp.lt.s32.totalorder %s24, 0
          %s222 = scalar_select %p221, %s24, 0
          %s223 = smul.addr %s222, 8
          %s224 = smul.addr %s223, 4
          %s225 = scalar_lea.vmem %s0, %s224
        $region16: #{multihead_attention.1} parent=11 // pred_fallthru
          _
        // Predicated region
        $region17: #{multihead_attention.1} parent=11 // pred_check
          %p226 = pneg %p79
        $region18: #{multihead_attention.1} parent=11 // pred_check_branch
          %228 = sbr.rel (%p226) target = $region20
        $region19: #{multihead_attention.1} parent=11 // pred_region
          %p229 = scmp.lt.s32.totalorder %s24, 0
          %s230 = scalar_select %p229, %s24, 0
          %s231 = smul.addr %s230, 8
          %s232 = smul.addr %s231, 4
          %s233 = scalar_lea.vmem %s1, %s232
        $region20: #{multihead_attention.1} parent=11 // pred_fallthru
          _
        // Predicated region
        $region21: #{multihead_attention.1} parent=11 // pred_check
          %p234 = pneg %p154
        $region22: #{multihead_attention.1} parent=11 // pred_check_branch
          %236 = sbr.rel (%p234) target = $region24
        $region23: #{multihead_attention.1} parent=11 // pred_region
          _
        $region24: #{multihead_attention.1} parent=11 // pred_fallthru
          _
        // Predicated region
        $region25: #{multihead_attention.1} parent=11 // pred_check
          %p237 = pneg %p175
        $region26: #{multihead_attention.1} parent=11 // pred_check_branch
          %239 = sbr.rel (%p237) target = $region28
        $region27: #{multihead_attention.1} parent=11 // pred_region
          _
        $region28: #{multihead_attention.1} parent=11 // pred_fallthru
          _
      $region12: #{multihead_attention.1} parent=5 // pred_fallthru
        _
      %p240 = scmp.lt.s32.totalorder %s15, 2
      // Predicated region
      $region29: #{multihead_attention.1} parent=5 // pred_check
        %p241 = pneg %p240
      $region30: #{multihead_attention.1} parent=5 // pred_check_branch
        %243 = sbr.rel (%p241) target = $region32
      $region31: #{multihead_attention.1} parent=5 // pred_region
        // Predicated region
        $region33: #{multihead_attention.1} parent=31 // pred_check
          %p244 = pneg %p101
        $region34: #{multihead_attention.1} parent=31 // pred_check_branch
          %246 = sbr.rel (%p244) target = $region36
        $region35: #{multihead_attention.1} parent=31 // pred_region
          %s247 = smul.u32 4, %s23
          %p248 = scmp.lt.s32.totalorder %s22, 0
          %s249 = scalar_select %p248, %s22, 0
          %p250 = scmp.lt.s32.totalorder %s247, 7
          %s251 = scalar_select %p250, %s247, 7
          %s252 = smul.addr %s249, 8
          %s253 = sadd.s32 %s251, %s252
          %s254 = smul.addr %s253, 4
          %s255 = scalar_lea.vmem %s2, %s254
          %s256 = smul.u32 4, %s23
        $region36: #{multihead_attention.1} parent=31 // pred_fallthru
          _
        // Predicated region
        $region37: #{multihead_attention.1} parent=31 // pred_check
          %p257 = pneg %p127
        $region38: #{multihead_attention.1} parent=31 // pred_check_branch
          %259 = sbr.rel (%p257) target = $region40
        $region39: #{multihead_attention.1} parent=31 // pred_region
          %s260 = smul.u32 4, %s23
          %p261 = scmp.lt.s32.totalorder %s260, 7
          %s262 = scalar_select %p261, %s260, 7
          %s263 = smul.addr %s262, 8
          %s264 = scalar_lea.vmem %s3, %s263
          %s265 = smul.u32 4, %s23
        $region40: #{multihead_attention.1} parent=31 // pred_fallthru
          _
      $region32: #{multihead_attention.1} parent=5 // pred_fallthru
        _
      %p266 = scmp.le.s32.totalorder 1, %s15
      %p267 = scmp.lt.s32.totalorder %s15, 3
      %p268 = pnand %p266, %p267
      %p269 = pneg %p268
      // Predicated region
      $region41: #{multihead_attention.1} parent=5 // pred_check
        _
      $region42: #{multihead_attention.1} parent=5 // pred_check_branch
        %271 = sbr.rel (%p268) target = $region44
      $region43: #{multihead_attention.1} parent=5 // pred_region
        %s272 = ssub.s32 %s15, 1
        %p273 = scmp.lt.s32.totalorder %s24, 0
        %s274 = scalar_select %p273, %s24, 0
        %s275 = smul.addr %s274, 8
        %s276 = smul.addr %s275, 4
        %s277 = scalar_lea.vmem %s0, %s276
        %p278 = pneg %p53
        %p279 = pneg %p50
        %p280 = scmp.lt.s32.totalorder %s24, 0
        %s281 = scalar_select %p280, %s24, 0
        %s282 = smul.addr %s281, 8
        %s283 = smul.addr %s282, 4
        %s284 = scalar_lea.vmem %s1, %s283
        %p285 = pneg %p79
        %p286 = pneg %p76
        %s287 = smul.u32 4, %s25
        %p288 = scmp.lt.s32.totalorder %s24, 0
        %s289 = scalar_select %p288, %s24, 0
        %p290 = scmp.lt.s32.totalorder %s287, 7
        %s291 = scalar_select %p290, %s287, 7
        %s292 = smul.addr %s289, 8
        %s293 = sadd.s32 %s291, %s292
        %s294 = smul.addr %s293, 4
        %s295 = scalar_lea.vmem %s2, %s294
        %p296 = pneg %p107
        %p297 = pneg %p104
        %s298 = smul.u32 4, %s25
        %p299 = scmp.lt.s32.totalorder %s298, 7
        %s300 = scalar_select %p299, %s298, 7
        %s301 = smul.addr %s300, 8
        %s302 = scalar_lea.vmem %s3, %s301
        %p303 = pneg %p133
        %p304 = pneg %p130
        %p305 = pneg %p154
        %p306 = pneg %p151
        %p307 = pneg %p175
        %p308 = pneg %p172
        %p309 = pneg %p203
        %p310 = pneg %p200
        %s311 = sand.u32 %s190, 1
        %s312 = scalar_lea.sflag [#allocation3], %s311
        %s313 = sand.u32 %s190, 1
        %s314 = smul.addr %s313, 32
        %s315 = scalar_lea.vmem [#allocation2], %s314
        %p316 = scmp.lt.s32.totalorder %s24, 0
        %s317 = scalar_select %p316, %s24, 0
        %s318 = smul.addr %s317, 8
        %s319 = smul.addr %s318, 4
        %s320 = scalar_lea.vmem %s0, %s319
        %p321 = scmp.lt.s32.totalorder %s24, 0
        %s322 = scalar_select %p321, %s24, 0
        %s323 = smul.addr %s322, 8
        %s324 = smul.addr %s323, 4
        %s325 = scalar_lea.vmem %s1, %s324
        %s326 = smul.u32 4, %s25
        %p327 = scmp.lt.s32.totalorder %s24, 0
        %s328 = scalar_select %p327, %s24, 0
        %p329 = scmp.lt.s32.totalorder %s326, 7
        %s330 = scalar_select %p329, %s326, 7
        %s331 = smul.addr %s328, 8
        %s332 = sadd.s32 %s330, %s331
        %s333 = smul.addr %s332, 4
        %s334 = scalar_lea.vmem %s2, %s333
        %s335 = smul.u32 4, %s25
        %s336 = smul.u32 4, %s25
        %p337 = scmp.lt.s32.totalorder %s336, 7
        %s338 = scalar_select %p337, %s336, 7
        %s339 = smul.addr %s338, 8
        %s340 = scalar_lea.vmem %s3, %s339
        %s341 = smul.u32 4, %s25
        %s342 = smul.u32 4, %s25
        %v344 = vld [vmem:[%s5] sm:$0xf]
        %v345 = vld [vmem:[%s320] sm:$0xf]
        %v346 = vld [vmem:[%s320 + $0x4] sm:$0xf]
        %v347 = vld [vmem:[%s320 + $0x8] sm:$0xf]
        %v348 = vld [vmem:[%s320 + $0xc] sm:$0xf]
        %v349 = vld [vmem:[%s320 + $0x10] sm:$0xf]
        %v350 = vld [vmem:[%s320 + $0x14] sm:$0xf]
        %v351 = vld [vmem:[%s320 + $0x18] sm:$0xf]
        %v352 = vld [vmem:[%s320 + $0x1c] sm:$0xf]
        %v353 = vld [vmem:[%s325] sm:$0xf]
        %v354 = vld [vmem:[%s325 + $0x4] sm:$0xf]
        %v355 = vld [vmem:[%s325 + $0x8] sm:$0xf]
        %v356 = vld [vmem:[%s325 + $0xc] sm:$0xf]
        %v357 = vld [vmem:[%s325 + $0x10] sm:$0xf]
        %v358 = vld [vmem:[%s325 + $0x14] sm:$0xf]
        %v359 = vld [vmem:[%s325 + $0x18] sm:$0xf]
        %v360 = vld [vmem:[%s325 + $0x1c] sm:$0xf]
        %v361 = vld [vmem:[%s334] sm:$0xf]
        %v362 = vld [vmem:[%s334 + $0x4] sm:$0xf]
        %v363 = vld [vmem:[%s334 + $0x8] sm:$0xf]
        %v364 = vld [vmem:[%s334 + $0xc] sm:$0xf]
        %v365 = vld [vmem:[%s4] sm:$0xf]
        %v366 = vld [vmem:[%s4 + $0x4] sm:$0xf]
        %v367 = vld [vmem:[%s4 + $0x8] sm:$0xf]
        %v368 = vld [vmem:[%s4 + $0xc] sm:$0xf]
        %v369 = vld [vmem:[%s4 + $0x10] sm:$0xf]
        %v370 = vld [vmem:[%s4 + $0x14] sm:$0xf]
        %v371 = vld [vmem:[%s4 + $0x18] sm:$0xf]
        %v372 = vld [vmem:[%s4 + $0x1c] sm:$0xf]
        %v373 = vlaneseq
        %v374 = vshrl.u32 %v373, 7
        %v375 = vsub.s32 0, %v374
        %v376 = vrot.slane %v344, %v375
        %v385 = vunpack.c.l.b16 %v345
        %v386 = vunpack.c.l.b16 %v346
        %v387 = vunpack.c.l.b16 %v347
        %v388 = vunpack.c.l.b16 %v348
        %v389 = vunpack.c.l.b16 %v349
        %v390 = vunpack.c.l.b16 %v350
        %v391 = vunpack.c.l.b16 %v351
        %v392 = vunpack.c.l.b16 %v352
        %v393 = vpack.c.b16 %v386, %v385
        %v394 = vpack.c.b16 %v388, %v387
        %v395 = vpack.c.b16 %v390, %v389
        %v396 = vpack.c.b16 %v392, %v391
        %v405 = vunpack.c.l.b16 %v365
        %v406 = vunpack.c.l.b16 %v366
        %v407 = vunpack.c.l.b16 %v367
        %v408 = vunpack.c.l.b16 %v368
        %v409 = vunpack.c.l.b16 %v369
        %v410 = vunpack.c.l.b16 %v370
        %v411 = vunpack.c.l.b16 %v371
        %v412 = vunpack.c.l.b16 %v372
        %v413 = vpack.c.b16 %v406, %v405
        %v414 = vpack.c.b16 %v408, %v407
        %v415 = vpack.c.b16 %v410, %v409
        %v416 = vpack.c.b16 %v412, %v411
        %vm421 = vcmask 523264
        %v423 = vsel %vm421, %v393, 0
        %v426 = vsel %vm421, %v394, 0
        %v429 = vsel %vm421, %v395, 0
        %v432 = vsel %vm421, %v396, 0
        %434 = vmatprep.subr.bf16.mxu0 0
        %435 = vmatpush1.bf16.msra.mxu0 %v413
        %436 = vmatprep.subr.bf16.mxu0 0
        %437 = vmatpush1.bf16.msra.mxu0 %v414
        %438 = vmatprep.subr.bf16.mxu0 0
        %439 = vmatpush1.bf16.msra.mxu0 %v415
        %440 = vmatprep.subr.bf16.mxu0 0
        %441 = vmatpush1.bf16.msra.mxu0 %v416
        %442 = vmatprep.subr.bf16.mxu0 0
        %443 = vmatpush1.bf16.msra.mxu0 0
        %444 = vmatprep.subr.bf16.mxu0 0
        %445 = vmatpush1.bf16.msra.mxu0 0
        %446 = vmatprep.subr.bf16.mxu0 0
        %447 = vmatpush1.bf16.msra.mxu0 0
        %448 = vmatprep.subr.bf16.mxu0 0
        %449 = vmatpush1.bf16.msra.mxu0 0
        %450 = vmatprep.subr.bf16.mxu0 0
        %451 = vmatpush1.bf16.msra.mxu0 0
        %452 = vmatprep.subr.bf16.mxu0 0
        %453 = vmatpush1.bf16.msra.mxu0 0
        %454 = vmatprep.subr.bf16.mxu0 0
        %455 = vmatpush1.bf16.msra.mxu0 0
        %456 = vmatprep.subr.bf16.mxu0 0
        %457 = vmatpush1.bf16.msra.mxu0 0
        %458 = vmatprep.subr.bf16.mxu0 0
        %459 = vmatpush1.bf16.msra.mxu0 0
        %460 = vmatprep.subr.bf16.mxu0 0
        %461 = vmatpush1.bf16.msra.mxu0 0
        %462 = vmatprep.subr.bf16.mxu0 0
        %463 = vmatpush1.bf16.msra.mxu0 0
        %464 = vmatprep.subr.bf16.mxu0 0
        %465 = vmatpush1.bf16.msra.mxu0 0
        %466 = vmatprep.mubr.bf16.mxu0 0
        %467 = vmatmul.mubr.bf16.gmra.mrb[0].mxu0 %v423
        %v468 = vpop.f32.mrb[0].mxu0
        %v469 = vadd.f32 %v376, %v468
        %v470 = vpop.f32.mrb[0].mxu0
        %v471 = vpop.f32.mrb[0].mxu0
        %v472 = vadd.f32 %v376, %v471
        %v473 = vpop.f32.mrb[0].mxu0
        %474 = vmatprep.mubr.bf16.mxu0 0
        %475 = vmatmul.mubr.bf16.gmra.mrb[0].mxu0 %v426
        %v476 = vpop.f32.mrb[0].mxu0
        %v477 = vadd.f32 %v376, %v476
        %v478 = vpop.f32.mrb[0].mxu0
        %v479 = vpop.f32.mrb[0].mxu0
        %v480 = vadd.f32 %v376, %v479
        %v481 = vpop.f32.mrb[0].mxu0
        %482 = vmatprep.mubr.bf16.mxu0 0
        %483 = vmatmul.mubr.bf16.gmra.mrb[0].mxu0 %v429
        %v484 = vpop.f32.mrb[0].mxu0
        %v485 = vadd.f32 %v376, %v484
        %v486 = vpop.f32.mrb[0].mxu0
        %v487 = vpop.f32.mrb[0].mxu0
        %v488 = vadd.f32 %v376, %v487
        %v489 = vpop.f32.mrb[0].mxu0
        %490 = vmatprep.mubr.bf16.mxu0 0
        %491 = vmatmul.mubr.bf16.gmra.mrb[0].mxu0 %v432
        %v492 = vpop.f32.mrb[0].mxu0
        %v493 = vadd.f32 %v376, %v492
        %v494 = vpop.f32.mrb[0].mxu0
        %v495 = vpop.f32.mrb[0].mxu0
        %v496 = vadd.f32 %v376, %v495
        %v497 = vpop.f32.mrb[0].mxu0
        %498 = vdwg.mxu0
        %v499 = vpack.c.bf16 %v472, %v469
        %v500 = vpack.c.bf16 %v480, %v477
        %v501 = vpack.c.bf16 %v488, %v485
        %v502 = vpack.c.bf16 %v496, %v493
        %s503 = scalar_lea.vmem %s4, 32
        %v504 = vld [vmem:[%s503] sm:$0xf]
        %v505 = vld [vmem:[%s503 + $0x4] sm:$0xf]
        %v506 = vld [vmem:[%s503 + $0x8] sm:$0xf]
        %v507 = vld [vmem:[%s503 + $0xc] sm:$0xf]
        %v508 = vld [vmem:[%s503 + $0x10] sm:$0xf]
        %v509 = vld [vmem:[%s503 + $0x14] sm:$0xf]
        %v510 = vld [vmem:[%s503 + $0x18] sm:$0xf]
        %v511 = vld [vmem:[%s503 + $0x1c] sm:$0xf]
        %v512 = vlaneseq
        %v513 = vshrl.u32 %v512, 7
        %v514 = vsub.s32 1, %v513
        %v515 = vrot.slane %v344, %v514
        %v524 = vunpack.c.l.b16 %v353
        %v525 = vunpack.c.l.b16 %v354
        %v526 = vunpack.c.l.b16 %v355
        %v527 = vunpack.c.l.b16 %v356
        %v528 = vunpack.c.l.b16 %v357
        %v529 = vunpack.c.l.b16 %v358
        %v530 = vunpack.c.l.b16 %v359
        %v531 = vunpack.c.l.b16 %v360
        %v532 = vpack.c.b16 %v525, %v524
        %v533 = vpack.c.b16 %v527, %v526
        %v534 = vpack.c.b16 %v529, %v528
        %v535 = vpack.c.b16 %v531, %v530
        %v544 = vunpack.c.l.b16 %v504
        %v545 = vunpack.c.l.b16 %v505
        %v546 = vunpack.c.l.b16 %v506
        %v547 = vunpack.c.l.b16 %v507
        %v548 = vunpack.c.l.b16 %v508
        %v549 = vunpack.c.l.b16 %v509
        %v550 = vunpack.c.l.b16 %v510
        %v551 = vunpack.c.l.b16 %v511
        %v552 = vpack.c.b16 %v545, %v544
        %v553 = vpack.c.b16 %v547, %v546
        %v554 = vpack.c.b16 %v549, %v548
        %v555 = vpack.c.b16 %v551, %v550
        %v561 = vsel %vm421, %v532, 0
        %v564 = vsel %vm421, %v533, 0
        %v567 = vsel %vm421, %v534, 0
        %v570 = vsel %vm421, %v535, 0
        %572 = vmatprep.subr.bf16.mxu0 0
        %573 = vmatpush1.bf16.msra.mxu0 %v552
        %574 = vmatprep.subr.bf16.mxu0 0
        %575 = vmatpush1.bf16.msra.mxu0 %v553
        %576 = vmatprep.subr.bf16.mxu0 0
        %577 = vmatpush1.bf16.msra.mxu0 %v554
        %578 = vmatprep.subr.bf16.mxu0 0
        %579 = vmatpush1.bf16.msra.mxu0 %v555
        %580 = vmatprep.subr.bf16.mxu0 0
        %581 = vmatpush1.bf16.msra.mxu0 0
        %582 = vmatprep.subr.bf16.mxu0 0
        %583 = vmatpush1.bf16.msra.mxu0 0
        %584 = vmatprep.subr.bf16.mxu0 0
        %585 = vmatpush1.bf16.msra.mxu0 0
        %586 = vmatprep.subr.bf16.mxu0 0
        %587 = vmatpush1.bf16.msra.mxu0 0
        %588 = vmatprep.subr.bf16.mxu0 0
        %589 = vmatpush1.bf16.msra.mxu0 0
        %590 = vmatprep.subr.bf16.mxu0 0
        %591 = vmatpush1.bf16.msra.mxu0 0
        %592 = vmatprep.subr.bf16.mxu0 0
        %593 = vmatpush1.bf16.msra.mxu0 0
        %594 = vmatprep.subr.bf16.mxu0 0
        %595 = vmatpush1.bf16.msra.mxu0 0
        %596 = vmatprep.subr.bf16.mxu0 0
        %597 = vmatpush1.bf16.msra.mxu0 0
        %598 = vmatprep.subr.bf16.mxu0 0
        %599 = vmatpush1.bf16.msra.mxu0 0
        %600 = vmatprep.subr.bf16.mxu0 0
        %601 = vmatpush1.bf16.msra.mxu0 0
        %602 = vmatprep.subr.bf16.mxu0 0
        %603 = vmatpush1.bf16.msra.mxu0 0
        %604 = vmatprep.mubr.bf16.mxu0 0
        %605 = vmatmul.mubr.bf16.gmra.mrb[0].mxu0 %v561
        %v606 = vpop.f32.mrb[0].mxu0
        %v607 = vadd.f32 %v515, %v606
        %v608 = vpop.f32.mrb[0].mxu0
        %v609 = vpop.f32.mrb[0].mxu0
        %v610 = vadd.f32 %v515, %v609
        %v611 = vpop.f32.mrb[0].mxu0
        %612 = vmatprep.mubr.bf16.mxu0 0
        %613 = vmatmul.mubr.bf16.gmra.mrb[0].mxu0 %v564
        %v614 = vpop.f32.mrb[0].mxu0
        %v615 = vadd.f32 %v515, %v614
        %v616 = vpop.f32.mrb[0].mxu0
        %v617 = vpop.f32.mrb[0].mxu0
        %v618 = vadd.f32 %v515, %v617
        %v619 = vpop.f32.mrb[0].mxu0
        %620 = vmatprep.mubr.bf16.mxu0 0
        %621 = vmatmul.mubr.bf16.gmra.mrb[0].mxu0 %v567
        %v622 = vpop.f32.mrb[0].mxu0
        %v623 = vadd.f32 %v515, %v622
        %v624 = vpop.f32.mrb[0].mxu0
        %v625 = vpop.f32.mrb[0].mxu0
        %v626 = vadd.f32 %v515, %v625
        %v627 = vpop.f32.mrb[0].mxu0
        %628 = vmatprep.mubr.bf16.mxu0 0
        %629 = vmatmul.mubr.bf16.gmra.mrb[0].mxu0 %v570
        %v630 = vpop.f32.mrb[0].mxu0
        %v631 = vadd.f32 %v515, %v630
        %v632 = vpop.f32.mrb[0].mxu0
        %v633 = vpop.f32.mrb[0].mxu0
        %v634 = vadd.f32 %v515, %v633
        %v635 = vpop.f32.mrb[0].mxu0
        %636 = vdwg.mxu0
        %v637 = vpack.c.bf16 %v610, %v607
        %v638 = vpack.c.bf16 %v618, %v615
        %v639 = vpack.c.bf16 %v626, %v623
        %v640 = vpack.c.bf16 %v634, %v631
        %s641 = scalar_lea.vmem %s4, 64
        %v642 = vld [vmem:[%s641] sm:$0xf]
        %v643 = vld [vmem:[%s641 + $0x4] sm:$0xf]
        %v644 = vld [vmem:[%s641 + $0x8] sm:$0xf]
        %v645 = vld [vmem:[%s641 + $0xc] sm:$0xf]
        %v646 = vld [vmem:[%s641 + $0x10] sm:$0xf]
        %v647 = vld [vmem:[%s641 + $0x14] sm:$0xf]
        %v648 = vld [vmem:[%s641 + $0x18] sm:$0xf]
        %v649 = vld [vmem:[%s641 + $0x1c] sm:$0xf]
        %v650 = vlaneseq
        %v651 = vshrl.u32 %v650, 7
        %v652 = vsub.s32 2, %v651
        %v653 = vrot.slane %v344, %v652
        %v658 = vunpack.c.l.b16 %v361
        %v659 = vunpack.c.l.b16 %v362
        %v660 = vunpack.c.l.b16 %v363
        %v661 = vunpack.c.l.b16 %v364
        %v662 = vpack.c.b16 %v659, %v658
        %v663 = vpack.c.b16 %v661, %v660
        %v672 = vunpack.c.l.b16 %v642
        %v673 = vunpack.c.l.b16 %v643
        %v674 = vunpack.c.l.b16 %v644
        %v675 = vunpack.c.l.b16 %v645
        %v676 = vunpack.c.l.b16 %v646
        %v677 = vunpack.c.l.b16 %v647
        %v678 = vunpack.c.l.b16 %v648
        %v679 = vunpack.c.l.b16 %v649
        %v680 = vpack.c.b16 %v673, %v672
        %v681 = vpack.c.b16 %v675, %v674
        %v682 = vpack.c.b16 %v677, %v676
        %v683 = vpack.c.b16 %v679, %v678
        %v689 = vsel %vm421, %v662, 0
        %v692 = vsel %vm421, %v663, 0
        %694 = vmatprep.subr.bf16.mxu0 0
        %695 = vmatpush1.bf16.msra.mxu0 %v680
        %696 = vmatprep.subr.bf16.mxu0 0
        %697 = vmatpush1.bf16.msra.mxu0 %v681
        %698 = vmatprep.subr.bf16.mxu0 0
        %699 = vmatpush1.bf16.msra.mxu0 %v682
        %700 = vmatprep.subr.bf16.mxu0 0
        %701 = vmatpush1.bf16.msra.mxu0 %v683
        %702 = vmatprep.subr.bf16.mxu0 0
        %703 = vmatpush1.bf16.msra.mxu0 0
        %704 = vmatprep.subr.bf16.mxu0 0
        %705 = vmatpush1.bf16.msra.mxu0 0
        %706 = vmatprep.subr.bf16.mxu0 0
        %707 = vmatpush1.bf16.msra.mxu0 0
        %708 = vmatprep.subr.bf16.mxu0 0
        %709 = vmatpush1.bf16.msra.mxu0 0
        %710 = vmatprep.subr.bf16.mxu0 0
        %711 = vmatpush1.bf16.msra.mxu0 0
        %712 = vmatprep.subr.bf16.mxu0 0
        %713 = vmatpush1.bf16.msra.mxu0 0
        %714 = vmatprep.subr.bf16.mxu0 0
        %715 = vmatpush1.bf16.msra.mxu0 0
        %716 = vmatprep.subr.bf16.mxu0 0
        %717 = vmatpush1.bf16.msra.mxu0 0
        %718 = vmatprep.subr.bf16.mxu0 0
        %719 = vmatpush1.bf16.msra.mxu0 0
        %720 = vmatprep.subr.bf16.mxu0 0
        %721 = vmatpush1.bf16.msra.mxu0 0
        %722 = vmatprep.subr.bf16.mxu0 0
        %723 = vmatpush1.bf16.msra.mxu0 0
        %724 = vmatprep.subr.bf16.mxu0 0
        %725 = vmatpush1.bf16.msra.mxu0 0
        %726 = vmatprep.mubr.bf16.mxu0 0
        %727 = vmatmul.mubr.bf16.gmra.mrb[0].mxu0 %v689
        %v728 = vpop.f32.mrb[0].mxu0
        %v729 = vadd.f32 %v653, %v728
        %v730 = vpop.f32.mrb[0].mxu0
        %v731 = vpop.f32.mrb[0].mxu0
        %v732 = vadd.f32 %v653, %v731
        %v733 = vpop.f32.mrb[0].mxu0
        %734 = vmatprep.mubr.bf16.mxu0 0
        %735 = vmatmul.mubr.bf16.gmra.mrb[0].mxu0 %v692
        %v736 = vpop.f32.mrb[0].mxu0
        %v737 = vadd.f32 %v653, %v736
        %v738 = vpop.f32.mrb[0].mxu0
        %v739 = vpop.f32.mrb[0].mxu0
        %v740 = vadd.f32 %v653, %v739
        %v741 = vpop.f32.mrb[0].mxu0
        %742 = vdwg.mxu0
        %v743 = vpack.c.bf16 %v732, %v729
        %v744 = vpack.c.bf16 %v740, %v737
        %v745 = vld [vmem:[%s340] sm:$0xff]
        %v746 = vld [vmem:[%s340 + $0x8] sm:$0xff]
        %v747 = vld [vmem:[%s340 + $0x10] sm:$0xff]
        %v748 = vld [vmem:[%s340 + $0x18] sm:$0xff]
        %vm749 = vcmask 130048
        %v751 = vsel %vm749, %v743, 0
        %v754 = vsel %vm749, %v744, 0
        %v757 = vsel %vm749, %v499, 0
        %v760 = vsel %vm749, %v500, 0
        %v763 = vsel %vm749, %v501, 0
        %v766 = vsel %vm749, %v502, 0
        %768 = vmatprep.subr.bf16.mxu0 0
        %769 = vmatpush1.bf16.xpose.msra.mxu0 %v757
        %770 = vmatprep.subr.bf16.mxu0 0
        %771 = vmatpush1.bf16.xpose.msra.mxu0 %v760
        %772 = vmatprep.subr.bf16.mxu0 0
        %773 = vmatpush1.bf16.xpose.msra.mxu0 %v763
        %774 = vmatprep.subr.bf16.mxu0 0
        %775 = vmatpush1.bf16.xpose.msra.mxu0 %v766
        %776 = vmatprep.subr.bf16.mxu0 0
        %777 = vmatpush1.bf16.xpose.msra.mxu0 0
        %778 = vmatprep.subr.bf16.mxu0 0
        %779 = vmatpush1.bf16.xpose.msra.mxu0 0
        %780 = vmatprep.subr.bf16.mxu0 0
        %781 = vmatpush1.bf16.xpose.msra.mxu0 0
        %782 = vmatprep.subr.bf16.mxu0 0
        %783 = vmatpush1.bf16.xpose.msra.mxu0 0
        %784 = vmatprep.subr.bf16.mxu0 0
        %785 = vmatpush1.bf16.xpose.msra.mxu0 0
        %786 = vmatprep.subr.bf16.mxu0 0
        %787 = vmatpush1.bf16.xpose.msra.mxu0 0
        %788 = vmatprep.subr.bf16.mxu0 0
        %789 = vmatpush1.bf16.xpose.msra.mxu0 0
        %790 = vmatprep.subr.bf16.mxu0 0
        %791 = vmatpush1.bf16.xpose.msra.mxu0 0
        %792 = vmatprep.subr.bf16.mxu0 0
        %793 = vmatpush1.bf16.xpose.msra.mxu0 0
        %794 = vmatprep.subr.bf16.mxu0 0
        %795 = vmatpush1.bf16.xpose.msra.mxu0 0
        %796 = vmatprep.subr.bf16.mxu0 0
        %797 = vmatpush1.bf16.xpose.msra.mxu0 0
        %798 = vmatprep.subr.bf16.mxu0 0
        %799 = vmatpush1.bf16.xpose.msra.mxu0 0
        %800 = vmatprep.mubr.bf16.mxu0 0
        %801 = vmatmul.mubr.bf16.gmra.mrb[0].mxu0 %v751
        %v802 = vpop.f32.mrb[0].mxu0
        %v803 = vadd.f32 %v745, %v802
        %v804 = vpop.f32.mrb[0].mxu0
        %v805 = vpop.f32.mrb[0].mxu0
        %v806 = vadd.f32 %v746, %v805
        %v807 = vpop.f32.mrb[0].mxu0
        %808 = vmatprep.mubr.bf16.mxu0 0
        %809 = vmatmul.mubr.bf16.gmra.mrb[0].mxu0 %v754
        %v810 = vpop.f32.mrb[0].mxu0
        %v811 = vadd.f32 %v747, %v810
        %v812 = vpop.f32.mrb[0].mxu0
        %v813 = vpop.f32.mrb[0].mxu0
        %v814 = vadd.f32 %v748, %v813
        %v815 = vpop.f32.mrb[0].mxu0
        %816 = vdwg.mxu0
        %v817 = vsel %vm421, %v803, -inf
        %818 = vmax.xlane.f32.xlu0 %v817
        %v819 = vpop.xlane.xlu0 %818
        %v820 = vsel %vm421, %v806, -inf
        %821 = vmax.xlane.f32.xlu0 %v820
        %v822 = vpop.xlane.xlu0 %821
        %v823 = vsel %vm421, %v811, -inf
        %824 = vmax.xlane.f32.xlu0 %v823
        %v825 = vpop.xlane.xlu0 %824
        %v826 = vsel %vm421, %v814, -inf
        %827 = vmax.xlane.f32.xlu0 %v826
        %v828 = vpop.xlane.xlu0 %827
        %v829 = vsub.f32 %v803, %v819
        %v830 = vsub.f32 %v806, %v822
        %v831 = vsub.f32 %v811, %v825
        %v832 = vsub.f32 %v814, %v828
        %v833 = vmul.f32 %v829, 1.442695
        %v834 = vpow.pop %v833
        %v835 = vmul.f32 %v830, 1.442695
        %v836 = vpow.pop %v835
        %v837 = vmul.f32 %v831, 1.442695
        %v838 = vpow.pop %v837
        %v839 = vmul.f32 %v832, 1.442695
        %v840 = vpow.pop %v839
        %v841 = vsel %vm421, %v834, 0.0
        %842 = vadd.xlane.f32.xlu0 %v841
        %v843 = vpop.xlane.xlu0 %842
        %v844 = vsel %vm421, %v836, 0.0
        %845 = vadd.xlane.f32.xlu0 %v844
        %v846 = vpop.xlane.xlu0 %845
        %v847 = vsel %vm421, %v838, 0.0
        %848 = vadd.xlane.f32.xlu0 %v847
        %v849 = vpop.xlane.xlu0 %848
        %v850 = vsel %vm421, %v840, 0.0
        %851 = vadd.xlane.f32.xlu0 %v850
        %v852 = vpop.xlane.xlu0 %851
        %v853 = vrcp.pop %v843
        %v854 = vrcp.pop %v846
        %v855 = vrcp.pop %v849
        %v856 = vrcp.pop %v852
        %v857 = vmul.f32 %v834, %v853
        %v858 = vmul.f32 %v836, %v854
        %v859 = vmul.f32 %v838, %v855
        %v860 = vmul.f32 %v840, %v856
        %v861 = vpack.c.bf16 %v858, %v857
        %v862 = vpack.c.bf16 %v860, %v859
        %v864 = vsel %vm421, %v861, 0
        %v867 = vsel %vm421, %v862, 0
        %869 = vmatprep.subr.bf16.mxu0 0
        %870 = vmatpush1.bf16.msra.mxu0 %v637
        %871 = vmatprep.subr.bf16.mxu0 0
        %872 = vmatpush1.bf16.msra.mxu0 %v638
        %873 = vmatprep.subr.bf16.mxu0 0
        %874 = vmatpush1.bf16.msra.mxu0 %v639
        %875 = vmatprep.subr.bf16.mxu0 0
        %876 = vmatpush1.bf16.msra.mxu0 %v640
        %877 = vmatprep.subr.bf16.mxu0 0
        %878 = vmatpush1.bf16.msra.mxu0 0
        %879 = vmatprep.subr.bf16.mxu0 0
        %880 = vmatpush1.bf16.msra.mxu0 0
        %881 = vmatprep.subr.bf16.mxu0 0
        %882 = vmatpush1.bf16.msra.mxu0 0
        %883 = vmatprep.subr.bf16.mxu0 0
        %884 = vmatpush1.bf16.msra.mxu0 0
        %885 = vmatprep.subr.bf16.mxu0 0
        %886 = vmatpush1.bf16.msra.mxu0 0
        %887 = vmatprep.subr.bf16.mxu0 0
        %888 = vmatpush1.bf16.msra.mxu0 0
        %889 = vmatprep.subr.bf16.mxu0 0
        %890 = vmatpush1.bf16.msra.mxu0 0
        %891 = vmatprep.subr.bf16.mxu0 0
        %892 = vmatpush1.bf16.msra.mxu0 0
        %893 = vmatprep.subr.bf16.mxu0 0
        %894 = vmatpush1.bf16.msra.mxu0 0
        %895 = vmatprep.subr.bf16.mxu0 0
        %896 = vmatpush1.bf16.msra.mxu0 0
        %897 = vmatprep.subr.bf16.mxu0 0
        %898 = vmatpush1.bf16.msra.mxu0 0
        %899 = vmatprep.subr.bf16.mxu0 0
        %900 = vmatpush1.bf16.msra.mxu0 0
        %901 = vmatprep.mubr.bf16.mxu0 0
        %902 = vmatmul.mubr.bf16.gmra.mrb[0].mxu0 %v864
        %v903 = vpop.f32.mrb[0].mxu0
        %v904 = vadd.f32 0.0, %v903
        %v905 = vpop.f32.mrb[0].mxu0
        %v906 = vpop.f32.mrb[0].mxu0
        %v907 = vadd.f32 0.0, %v906
        %v908 = vpop.f32.mrb[0].mxu0
        %909 = vmatprep.mubr.bf16.mxu0 0
        %910 = vmatmul.mubr.bf16.gmra.mrb[0].mxu0 %v867
        %v911 = vpop.f32.mrb[0].mxu0
        %v912 = vadd.f32 0.0, %v911
        %v913 = vpop.f32.mrb[0].mxu0
        %v914 = vpop.f32.mrb[0].mxu0
        %v915 = vadd.f32 0.0, %v914
        %v916 = vpop.f32.mrb[0].mxu0
        %917 = vdwg.mxu0
        %920 = vrot.lane.b32.xlu0 %v743, 112
        %v921 = vpop.permute.xlu0 %920
        %922 = vrot.lane.b32.xlu0 %v744, 112
        %v923 = vpop.permute.xlu0 %922
        %928 = vrot.lane.b32.xlu0 %v499, 112
        %v929 = vpop.permute.xlu0 %928
        %930 = vrot.lane.b32.xlu0 %v500, 112
        %v931 = vpop.permute.xlu0 %930
        %932 = vrot.lane.b32.xlu0 %v501, 112
        %v933 = vpop.permute.xlu0 %932
        %934 = vrot.lane.b32.xlu0 %v502, 112
        %v935 = vpop.permute.xlu0 %934
        %v937 = vsel %vm749, %v921, 0
        %v940 = vsel %vm749, %v923, 0
        %v943 = vsel %vm749, %v929, 0
        %v946 = vsel %vm749, %v931, 0
        %v949 = vsel %vm749, %v933, 0
        %v952 = vsel %vm749, %v935, 0
        %954 = vmatprep.subr.bf16.mxu0 0
        %955 = vmatpush1.bf16.xpose.msra.mxu0 %v943
        %956 = vmatprep.subr.bf16.mxu0 0
        %957 = vmatpush1.bf16.xpose.msra.mxu0 %v946
        %958 = vmatprep.subr.bf16.mxu0 0
        %959 = vmatpush1.bf16.xpose.msra.mxu0 %v949
        %960 = vmatprep.subr.bf16.mxu0 0
        %961 = vmatpush1.bf16.xpose.msra.mxu0 %v952
        %962 = vmatprep.subr.bf16.mxu0 0
        %963 = vmatpush1.bf16.xpose.msra.mxu0 0
        %964 = vmatprep.subr.bf16.mxu0 0
        %965 = vmatpush1.bf16.xpose.msra.mxu0 0
        %966 = vmatprep.subr.bf16.mxu0 0
        %967 = vmatpush1.bf16.xpose.msra.mxu0 0
        %968 = vmatprep.subr.bf16.mxu0 0
        %969 = vmatpush1.bf16.xpose.msra.mxu0 0
        %970 = vmatprep.subr.bf16.mxu0 0
        %971 = vmatpush1.bf16.xpose.msra.mxu0 0
        %972 = vmatprep.subr.bf16.mxu0 0
        %973 = vmatpush1.bf16.xpose.msra.mxu0 0
        %974 = vmatprep.subr.bf16.mxu0 0
        %975 = vmatpush1.bf16.xpose.msra.mxu0 0
        %976 = vmatprep.subr.bf16.mxu0 0
        %977 = vmatpush1.bf16.xpose.msra.mxu0 0
        %978 = vmatprep.subr.bf16.mxu0 0
        %979 = vmatpush1.bf16.xpose.msra.mxu0 0
        %980 = vmatprep.subr.bf16.mxu0 0
        %981 = vmatpush1.bf16.xpose.msra.mxu0 0
        %982 = vmatprep.subr.bf16.mxu0 0
        %983 = vmatpush1.bf16.xpose.msra.mxu0 0
        %984 = vmatprep.subr.bf16.mxu0 0
        %985 = vmatpush1.bf16.xpose.msra.mxu0 0
        %986 = vmatprep.mubr.bf16.mxu0 0
        %987 = vmatmul.mubr.bf16.gmra.mrb[0].mxu0 %v937
        %v988 = vpop.f32.mrb[0].mxu0
        %v989 = vadd.f32 %v745, %v988
        %v990 = vpop.f32.mrb[0].mxu0
        %v991 = vpop.f32.mrb[0].mxu0
        %v992 = vadd.f32 %v746, %v991
        %v993 = vpop.f32.mrb[0].mxu0
        %994 = vmatprep.mubr.bf16.mxu0 0
        %995 = vmatmul.mubr.bf16.gmra.mrb[0].mxu0 %v940
        %v996 = vpop.f32.mrb[0].mxu0
        %v997 = vadd.f32 %v747, %v996
        %v998 = vpop.f32.mrb[0].mxu0
        %v999 = vpop.f32.mrb[0].mxu0
        %v1000 = vadd.f32 %v748, %v999
        %v1001 = vpop.f32.mrb[0].mxu0
        %1002 = vdwg.mxu0
        %v1003 = vsel %vm421, %v989, -inf
        %1004 = vmax.xlane.f32.xlu0 %v1003
        %v1005 = vpop.xlane.xlu0 %1004
        %v1006 = vsel %vm421, %v992, -inf
        %1007 = vmax.xlane.f32.xlu0 %v1006
        %v1008 = vpop.xlane.xlu0 %1007
        %v1009 = vsel %vm421, %v997, -inf
        %1010 = vmax.xlane.f32.xlu0 %v1009
        %v1011 = vpop.xlane.xlu0 %1010
        %v1012 = vsel %vm421, %v1000, -inf
        %1013 = vmax.xlane.f32.xlu0 %v1012
        %v1014 = vpop.xlane.xlu0 %1013
        %v1015 = vsub.f32 %v989, %v1005
        %v1016 = vsub.f32 %v992, %v1008
        %v1017 = vsub.f32 %v997, %v1011
        %v1018 = vsub.f32 %v1000, %v1014
        %v1019 = vmul.f32 %v1015, 1.442695
        %v1020 = vpow.pop %v1019
        %v1021 = vmul.f32 %v1016, 1.442695
        %v1022 = vpow.pop %v1021
        %v1023 = vmul.f32 %v1017, 1.442695
        %v1024 = vpow.pop %v1023
        %v1025 = vmul.f32 %v1018, 1.442695
        %v1026 = vpow.pop %v1025
        %v1027 = vsel %vm421, %v1020, 0.0
        %1028 = vadd.xlane.f32.xlu0 %v1027
        %v1029 = vpop.xlane.xlu0 %1028
        %v1030 = vsel %vm421, %v1022, 0.0
        %1031 = vadd.xlane.f32.xlu0 %v1030
        %v1032 = vpop.xlane.xlu0 %1031
        %v1033 = vsel %vm421, %v1024, 0.0
        %1034 = vadd.xlane.f32.xlu0 %v1033
        %v1035 = vpop.xlane.xlu0 %1034
        %v1036 = vsel %vm421, %v1026, 0.0
        %1037 = vadd.xlane.f32.xlu0 %v1036
        %v1038 = vpop.xlane.xlu0 %1037
        %v1039 = vrcp.pop %v1029
        %v1040 = vrcp.pop %v1032
        %v1041 = vrcp.pop %v1035
        %v1042 = vrcp.pop %v1038
        %v1043 = vmul.f32 %v1020, %v1039
        %v1044 = vmul.f32 %v1022, %v1040
        %v1045 = vmul.f32 %v1024, %v1041
        %v1046 = vmul.f32 %v1026, %v1042
        %v1047 = vpack.c.bf16 %v1044, %v1043
        %v1048 = vpack.c.bf16 %v1046, %v1045
        %1053 = vrot.lane.b32.xlu0 %v637, 112
        %v1054 = vpop.permute.xlu0 %1053
        %1055 = vrot.lane.b32.xlu0 %v638, 112
        %v1056 = vpop.permute.xlu0 %1055
        %1057 = vrot.lane.b32.xlu0 %v639, 112
        %v1058 = vpop.permute.xlu0 %1057
        %1059 = vrot.lane.b32.xlu0 %v640, 112
        %v1060 = vpop.permute.xlu0 %1059
        %v1066 = vsel %vm421, %v1047, 0
        %v1069 = vsel %vm421, %v1048, 0
        %1071 = vmatprep.subr.bf16.mxu0 0
        %1072 = vmatpush1.bf16.msra.mxu0 %v1054
        %1073 = vmatprep.subr.bf16.mxu0 0
        %1074 = vmatpush1.bf16.msra.mxu0 %v1056
        %1075 = vmatprep.subr.bf16.mxu0 0
        %1076 = vmatpush1.bf16.msra.mxu0 %v1058
        %1077 = vmatprep.subr.bf16.mxu0 0
        %1078 = vmatpush1.bf16.msra.mxu0 %v1060
        %1079 = vmatprep.subr.bf16.mxu0 0
        %1080 = vmatpush1.bf16.msra.mxu0 0
        %1081 = vmatprep.subr.bf16.mxu0 0
        %1082 = vmatpush1.bf16.msra.mxu0 0
        %1083 = vmatprep.subr.bf16.mxu0 0
        %1084 = vmatpush1.bf16.msra.mxu0 0
        %1085 = vmatprep.subr.bf16.mxu0 0
        %1086 = vmatpush1.bf16.msra.mxu0 0
        %1087 = vmatprep.subr.bf16.mxu0 0
        %1088 = vmatpush1.bf16.msra.mxu0 0
        %1089 = vmatprep.subr.bf16.mxu0 0
        %1090 = vmatpush1.bf16.msra.mxu0 0
        %1091 = vmatprep.subr.bf16.mxu0 0
        %1092 = vmatpush1.bf16.msra.mxu0 0
        %1093 = vmatprep.subr.bf16.mxu0 0
        %1094 = vmatpush1.bf16.msra.mxu0 0
        %1095 = vmatprep.subr.bf16.mxu0 0
        %1096 = vmatpush1.bf16.msra.mxu0 0
        %1097 = vmatprep.subr.bf16.mxu0 0
        %1098 = vmatpush1.bf16.msra.mxu0 0
        %1099 = vmatprep.subr.bf16.mxu0 0
        %1100 = vmatpush1.bf16.msra.mxu0 0
        %1101 = vmatprep.subr.bf16.mxu0 0
        %1102 = vmatpush1.bf16.msra.mxu0 0
        %1103 = vmatprep.mubr.bf16.mxu0 0
        %1104 = vmatmul.mubr.bf16.gmra.mrb[0].mxu0 %v1066
        %v1105 = vpop.f32.mrb[0].mxu0
        %v1106 = vadd.f32 0.0, %v1105
        %v1107 = vpop.f32.mrb[0].mxu0
        %v1108 = vpop.f32.mrb[0].mxu0
        %v1109 = vadd.f32 0.0, %v1108
        %v1110 = vpop.f32.mrb[0].mxu0
        %1111 = vmatprep.mubr.bf16.mxu0 0
        %1112 = vmatmul.mubr.bf16.gmra.mrb[0].mxu0 %v1069
        %v1113 = vpop.f32.mrb[0].mxu0
        %v1114 = vadd.f32 0.0, %v1113
        %v1115 = vpop.f32.mrb[0].mxu0
        %v1116 = vpop.f32.mrb[0].mxu0
        %v1117 = vadd.f32 0.0, %v1116
        %v1118 = vpop.f32.mrb[0].mxu0
        %1119 = vdwg.mxu0
        %1120 = vrot.lane.b32.xlu0 %v743, 96
        %v1121 = vpop.permute.xlu0 %1120
        %1122 = vrot.lane.b32.xlu0 %v744, 96
        %v1123 = vpop.permute.xlu0 %1122
        %1124 = vrot.lane.b32.xlu0 %v499, 96
        %v1125 = vpop.permute.xlu0 %1124
        %1126 = vrot.lane.b32.xlu0 %v500, 96
        %v1127 = vpop.permute.xlu0 %1126
        %1128 = vrot.lane.b32.xlu0 %v501, 96
        %v1129 = vpop.permute.xlu0 %1128
        %1130 = vrot.lane.b32.xlu0 %v502, 96
        %v1131 = vpop.permute.xlu0 %1130
        %v1133 = vsel %vm749, %v1121, 0
        %v1136 = vsel %vm749, %v1123, 0
        %v1139 = vsel %vm749, %v1125, 0
        %v1142 = vsel %vm749, %v1127, 0
        %v1145 = vsel %vm749, %v1129, 0
        %v1148 = vsel %vm749, %v1131, 0
        %1150 = vmatprep.subr.bf16.mxu0 0
        %1151 = vmatpush1.bf16.xpose.msra.mxu0 %v1139
        %1152 = vmatprep.subr.bf16.mxu0 0
        %1153 = vmatpush1.bf16.xpose.msra.mxu0 %v1142
        %1154 = vmatprep.subr.bf16.mxu0 0
        %1155 = vmatpush1.bf16.xpose.msra.mxu0 %v1145
        %1156 = vmatprep.subr.bf16.mxu0 0
        %1157 = vmatpush1.bf16.xpose.msra.mxu0 %v1148
        %1158 = vmatprep.subr.bf16.mxu0 0
        %1159 = vmatpush1.bf16.xpose.msra.mxu0 0
        %1160 = vmatprep.subr.bf16.mxu0 0
        %1161 = vmatpush1.bf16.xpose.msra.mxu0 0
        %1162 = vmatprep.subr.bf16.mxu0 0
        %1163 = vmatpush1.bf16.xpose.msra.mxu0 0
        %1164 = vmatprep.subr.bf16.mxu0 0
        %1165 = vmatpush1.bf16.xpose.msra.mxu0 0
        %1166 = vmatprep.subr.bf16.mxu0 0
        %1167 = vmatpush1.bf16.xpose.msra.mxu0 0
        %1168 = vmatprep.subr.bf16.mxu0 0
        %1169 = vmatpush1.bf16.xpose.msra.mxu0 0
        %1170 = vmatprep.subr.bf16.mxu0 0
        %1171 = vmatpush1.bf16.xpose.msra.mxu0 0
        %1172 = vmatprep.subr.bf16.mxu0 0
        %1173 = vmatpush1.bf16.xpose.msra.mxu0 0
        %1174 = vmatprep.subr.bf16.mxu0 0
        %1175 = vmatpush1.bf16.xpose.msra.mxu0 0
        %1176 = vmatprep.subr.bf16.mxu0 0
        %1177 = vmatpush1.bf16.xpose.msra.mxu0 0
        %1178 = vmatprep.subr.bf16.mxu0 0
        %1179 = vmatpush1.bf16.xpose.msra.mxu0 0
        %1180 = vmatprep.subr.bf16.mxu0 0
        %1181 = vmatpush1.bf16.xpose.msra.mxu0 0
        %1182 = vmatprep.mubr.bf16.mxu0 0
        %1183 = vmatmul.mubr.bf16.gmra.mrb[0].mxu0 %v1133
        %v1184 = vpop.f32.mrb[0].mxu0
        %v1185 = vadd.f32 %v745, %v1184
        %v1186 = vpop.f32.mrb[0].mxu0
        %v1187 = vpop.f32.mrb[0].mxu0
        %v1188 = vadd.f32 %v746, %v1187
        %v1189 = vpop.f32.mrb[0].mxu0
        %1190 = vmatprep.mubr.bf16.mxu0 0
        %1191 = vmatmul.mubr.bf16.gmra.mrb[0].mxu0 %v1136
        %v1192 = vpop.f32.mrb[0].mxu0
        %v1193 = vadd.f32 %v747, %v1192
        %v1194 = vpop.f32.mrb[0].mxu0
        %v1195 = vpop.f32.mrb[0].mxu0
        %v1196 = vadd.f32 %v748, %v1195
        %v1197 = vpop.f32.mrb[0].mxu0
        %1198 = vdwg.mxu0
        %v1199 = vsel %vm421, %v1185, -inf
        %1200 = vmax.xlane.f32.xlu0 %v1199
        %v1201 = vpop.xlane.xlu0 %1200
        %v1202 = vsel %vm421, %v1188, -inf
        %1203 = vmax.xlane.f32.xlu0 %v1202
        %v1204 = vpop.xlane.xlu0 %1203
        %v1205 = vsel %vm421, %v1193, -inf
        %1206 = vmax.xlane.f32.xlu0 %v1205
        %v1207 = vpop.xlane.xlu0 %1206
        %v1208 = vsel %vm421, %v1196, -inf
        %1209 = vmax.xlane.f32.xlu0 %v1208
        %v1210 = vpop.xlane.xlu0 %1209
        %v1211 = vsub.f32 %v1185, %v1201
        %v1212 = vsub.f32 %v1188, %v1204
        %v1213 = vsub.f32 %v1193, %v1207
        %v1214 = vsub.f32 %v1196, %v1210
        %v1215 = vmul.f32 %v1211, 1.442695
        %v1216 = vpow.pop %v1215
        %v1217 = vmul.f32 %v1212, 1.442695
        %v1218 = vpow.pop %v1217
        %v1219 = vmul.f32 %v1213, 1.442695
        %v1220 = vpow.pop %v1219
        %v1221 = vmul.f32 %v1214, 1.442695
        %v1222 = vpow.pop %v1221
        %v1223 = vsel %vm421, %v1216, 0.0
        %1224 = vadd.xlane.f32.xlu0 %v1223
        %v1225 = vpop.xlane.xlu0 %1224
        %v1226 = vsel %vm421, %v1218, 0.0
        %1227 = vadd.xlane.f32.xlu0 %v1226
        %v1228 = vpop.xlane.xlu0 %1227
        %v1229 = vsel %vm421, %v1220, 0.0
        %1230 = vadd.xlane.f32.xlu0 %v1229
        %v1231 = vpop.xlane.xlu0 %1230
        %v1232 = vsel %vm421, %v1222, 0.0
        %1233 = vadd.xlane.f32.xlu0 %v1232
        %v1234 = vpop.xlane.xlu0 %1233
        %v1235 = vrcp.pop %v1225
        %v1236 = vrcp.pop %v1228
        %v1237 = vrcp.pop %v1231
        %v1238 = vrcp.pop %v1234
        %v1239 = vmul.f32 %v1216, %v1235
        %v1240 = vmul.f32 %v1218, %v1236
        %v1241 = vmul.f32 %v1220, %v1237
        %v1242 = vmul.f32 %v1222, %v1238
        %v1243 = vpack.c.bf16 %v1240, %v1239
        %v1244 = vpack.c.bf16 %v1242, %v1241
        %1245 = vrot.lane.b32.xlu0 %v637, 96
        %v1246 = vpop.permute.xlu0 %1245
        %1247 = vrot.lane.b32.xlu0 %v638, 96
        %v1248 = vpop.permute.xlu0 %1247
        %1249 = vrot.lane.b32.xlu0 %v639, 96
        %v1250 = vpop.permute.xlu0 %1249
        %1251 = vrot.lane.b32.xlu0 %v640, 96
        %v1252 = vpop.permute.xlu0 %1251
        %v1258 = vsel %vm421, %v1243, 0
        %v1261 = vsel %vm421, %v1244, 0
        %1263 = vmatprep.subr.bf16.mxu0 0
        %1264 = vmatpush1.bf16.msra.mxu0 %v1246
        %1265 = vmatprep.subr.bf16.mxu0 0
        %1266 = vmatpush1.bf16.msra.mxu0 %v1248
        %1267 = vmatprep.subr.bf16.mxu0 0
        %1268 = vmatpush1.bf16.msra.mxu0 %v1250
        %1269 = vmatprep.subr.bf16.mxu0 0
        %1270 = vmatpush1.bf16.msra.mxu0 %v1252
        %1271 = vmatprep.subr.bf16.mxu0 0
        %1272 = vmatpush1.bf16.msra.mxu0 0
        %1273 = vmatprep.subr.bf16.mxu0 0
        %1274 = vmatpush1.bf16.msra.mxu0 0
        %1275 = vmatprep.subr.bf16.mxu0 0
        %1276 = vmatpush1.bf16.msra.mxu0 0
        %1277 = vmatprep.subr.bf16.mxu0 0
        %1278 = vmatpush1.bf16.msra.mxu0 0
        %1279 = vmatprep.subr.bf16.mxu0 0
        %1280 = vmatpush1.bf16.msra.mxu0 0
        %1281 = vmatprep.subr.bf16.mxu0 0
        %1282 = vmatpush1.bf16.msra.mxu0 0
        %1283 = vmatprep.subr.bf16.mxu0 0
        %1284 = vmatpush1.bf16.msra.mxu0 0
        %1285 = vmatprep.subr.bf16.mxu0 0
        %1286 = vmatpush1.bf16.msra.mxu0 0
        %1287 = vmatprep.subr.bf16.mxu0 0
        %1288 = vmatpush1.bf16.msra.mxu0 0
        %1289 = vmatprep.subr.bf16.mxu0 0
        %1290 = vmatpush1.bf16.msra.mxu0 0
        %1291 = vmatprep.subr.bf16.mxu0 0
        %1292 = vmatpush1.bf16.msra.mxu0 0
        %1293 = vmatprep.subr.bf16.mxu0 0
        %1294 = vmatpush1.bf16.msra.mxu0 0
        %1295 = vmatprep.mubr.bf16.mxu0 0
        %1296 = vmatmul.mubr.bf16.gmra.mrb[0].mxu0 %v1258
        %v1297 = vpop.f32.mrb[0].mxu0
        %v1298 = vadd.f32 0.0, %v1297
        %v1299 = vpop.f32.mrb[0].mxu0
        %v1300 = vpop.f32.mrb[0].mxu0
        %v1301 = vadd.f32 0.0, %v1300
        %v1302 = vpop.f32.mrb[0].mxu0
        %1303 = vmatprep.mubr.bf16.mxu0 0
        %1304 = vmatmul.mubr.bf16.gmra.mrb[0].mxu0 %v1261
        %v1305 = vpop.f32.mrb[0].mxu0
        %v1306 = vadd.f32 0.0, %v1305
        %v1307 = vpop.f32.mrb[0].mxu0
        %v1308 = vpop.f32.mrb[0].mxu0
        %v1309 = vadd.f32 0.0, %v1308
        %v1310 = vpop.f32.mrb[0].mxu0
        %1311 = vdwg.mxu0
        %1312 = vrot.lane.b32.xlu0 %v743, 80
        %v1313 = vpop.permute.xlu0 %1312
        %1314 = vrot.lane.b32.xlu0 %v744, 80
        %v1315 = vpop.permute.xlu0 %1314
        %1316 = vrot.lane.b32.xlu0 %v499, 80
        %v1317 = vpop.permute.xlu0 %1316
        %1318 = vrot.lane.b32.xlu0 %v500, 80
        %v1319 = vpop.permute.xlu0 %1318
        %1320 = vrot.lane.b32.xlu0 %v501, 80
        %v1321 = vpop.permute.xlu0 %1320
        %1322 = vrot.lane.b32.xlu0 %v502, 80
        %v1323 = vpop.permute.xlu0 %1322
        %v1325 = vsel %vm749, %v1313, 0
        %v1328 = vsel %vm749, %v1315, 0
        %v1331 = vsel %vm749, %v1317, 0
        %v1334 = vsel %vm749, %v1319, 0
        %v1337 = vsel %vm749, %v1321, 0
        %v1340 = vsel %vm749, %v1323, 0
        %1342 = vmatprep.subr.bf16.mxu0 0
        %1343 = vmatpush1.bf16.xpose.msra.mxu0 %v1331
        %1344 = vmatprep.subr.bf16.mxu0 0
        %1345 = vmatpush1.bf16.xpose.msra.mxu0 %v1334
        %1346 = vmatprep.subr.bf16.mxu0 0
        %1347 = vmatpush1.bf16.xpose.msra.mxu0 %v1337
        %1348 = vmatprep.subr.bf16.mxu0 0
        %1349 = vmatpush1.bf16.xpose.msra.mxu0 %v1340
        %1350 = vmatprep.subr.bf16.mxu0 0
        %1351 = vmatpush1.bf16.xpose.msra.mxu0 0
        %1352 = vmatprep.subr.bf16.mxu0 0
        %1353 = vmatpush1.bf16.xpose.msra.mxu0 0
        %1354 = vmatprep.subr.bf16.mxu0 0
        %1355 = vmatpush1.bf16.xpose.msra.mxu0 0
        %1356 = vmatprep.subr.bf16.mxu0 0
        %1357 = vmatpush1.bf16.xpose.msra.mxu0 0
        %1358 = vmatprep.subr.bf16.mxu0 0
        %1359 = vmatpush1.bf16.xpose.msra.mxu0 0
        %1360 = vmatprep.subr.bf16.mxu0 0
        %1361 = vmatpush1.bf16.xpose.msra.mxu0 0
        %1362 = vmatprep.subr.bf16.mxu0 0
        %1363 = vmatpush1.bf16.xpose.msra.mxu0 0
        %1364 = vmatprep.subr.bf16.mxu0 0
        %1365 = vmatpush1.bf16.xpose.msra.mxu0 0
        %1366 = vmatprep.subr.bf16.mxu0 0
        %1367 = vmatpush1.bf16.xpose.msra.mxu0 0
        %1368 = vmatprep.subr.bf16.mxu0 0
        %1369 = vmatpush1.bf16.xpose.msra.mxu0 0
        %1370 = vmatprep.subr.bf16.mxu0 0
        %1371 = vmatpush1.bf16.xpose.msra.mxu0 0
        %1372 = vmatprep.subr.bf16.mxu0 0
        %1373 = vmatpush1.bf16.xpose.msra.mxu0 0
        %1374 = vmatprep.mubr.bf16.mxu0 0
        %1375 = vmatmul.mubr.bf16.gmra.mrb[0].mxu0 %v1325
        %v1376 = vpop.f32.mrb[0].mxu0
        %v1377 = vadd.f32 %v745, %v1376
        %v1378 = vpop.f32.mrb[0].mxu0
        %v1379 = vpop.f32.mrb[0].mxu0
        %v1380 = vadd.f32 %v746, %v1379
        %v1381 = vpop.f32.mrb[0].mxu0
        %1382 = vmatprep.mubr.bf16.mxu0 0
        %1383 = vmatmul.mubr.bf16.gmra.mrb[0].mxu0 %v1328
        %v1384 = vpop.f32.mrb[0].mxu0
        %v1385 = vadd.f32 %v747, %v1384
        %v1386 = vpop.f32.mrb[0].mxu0
        %v1387 = vpop.f32.mrb[0].mxu0
        %v1388 = vadd.f32 %v748, %v1387
        %v1389 = vpop.f32.mrb[0].mxu0
        %1390 = vdwg.mxu0
        %v1391 = vsel %vm421, %v1377, -inf
        %1392 = vmax.xlane.f32.xlu0 %v1391
        %v1393 = vpop.xlane.xlu0 %1392
        %v1394 = vsel %vm421, %v1380, -inf
        %1395 = vmax.xlane.f32.xlu0 %v1394
        %v1396 = vpop.xlane.xlu0 %1395
        %v1397 = vsel %vm421, %v1385, -inf
        %1398 = vmax.xlane.f32.xlu0 %v1397
        %v1399 = vpop.xlane.xlu0 %1398
        %v1400 = vsel %vm421, %v1388, -inf
        %1401 = vmax.xlane.f32.xlu0 %v1400
        %v1402 = vpop.xlane.xlu0 %1401
        %v1403 = vsub.f32 %v1377, %v1393
        %v1404 = vsub.f32 %v1380, %v1396
        %v1405 = vsub.f32 %v1385, %v1399
        %v1406 = vsub.f32 %v1388, %v1402
        %v1407 = vmul.f32 %v1403, 1.442695
        %v1408 = vpow.pop %v1407
        %v1409 = vmul.f32 %v1404, 1.442695
        %v1410 = vpow.pop %v1409
        %v1411 = vmul.f32 %v1405, 1.442695
        %v1412 = vpow.pop %v1411
        %v1413 = vmul.f32 %v1406, 1.442695
        %v1414 = vpow.pop %v1413
        %v1415 = vsel %vm421, %v1408, 0.0
        %1416 = vadd.xlane.f32.xlu0 %v1415
        %v1417 = vpop.xlane.xlu0 %1416
        %v1418 = vsel %vm421, %v1410, 0.0
        %1419 = vadd.xlane.f32.xlu0 %v1418
        %v1420 = vpop.xlane.xlu0 %1419
        %v1421 = vsel %vm421, %v1412, 0.0
        %1422 = vadd.xlane.f32.xlu0 %v1421
        %v1423 = vpop.xlane.xlu0 %1422
        %v1424 = vsel %vm421, %v1414, 0.0
        %1425 = vadd.xlane.f32.xlu0 %v1424
        %v1426 = vpop.xlane.xlu0 %1425
        %v1427 = vrcp.pop %v1417
        %v1428 = vrcp.pop %v1420
        %v1429 = vrcp.pop %v1423
        %v1430 = vrcp.pop %v1426
        %v1431 = vmul.f32 %v1408, %v1427
        %v1432 = vmul.f32 %v1410, %v1428
        %v1433 = vmul.f32 %v1412, %v1429
        %v1434 = vmul.f32 %v1414, %v1430
        %v1435 = vpack.c.bf16 %v1432, %v1431
        %v1436 = vpack.c.bf16 %v1434, %v1433
        %1437 = vrot.lane.b32.xlu0 %v637, 80
        %v1438 = vpop.permute.xlu0 %1437
        %1439 = vrot.lane.b32.xlu0 %v638, 80
        %v1440 = vpop.permute.xlu0 %1439
        %1441 = vrot.lane.b32.xlu0 %v639, 80
        %v1442 = vpop.permute.xlu0 %1441
        %1443 = vrot.lane.b32.xlu0 %v640, 80
        %v1444 = vpop.permute.xlu0 %1443
        %v1450 = vsel %vm421, %v1435, 0
        %v1453 = vsel %vm421, %v1436, 0
        %1455 = vmatprep.subr.bf16.mxu0 0
        %1456 = vmatpush1.bf16.msra.mxu0 %v1438
        %1457 = vmatprep.subr.bf16.mxu0 0
        %1458 = vmatpush1.bf16.msra.mxu0 %v1440
        %1459 = vmatprep.subr.bf16.mxu0 0
        %1460 = vmatpush1.bf16.msra.mxu0 %v1442
        %1461 = vmatprep.subr.bf16.mxu0 0
        %1462 = vmatpush1.bf16.msra.mxu0 %v1444
        %1463 = vmatprep.subr.bf16.mxu0 0
        %1464 = vmatpush1.bf16.msra.mxu0 0
        %1465 = vmatprep.subr.bf16.mxu0 0
        %1466 = vmatpush1.bf16.msra.mxu0 0
        %1467 = vmatprep.subr.bf16.mxu0 0
        %1468 = vmatpush1.bf16.msra.mxu0 0
        %1469 = vmatprep.subr.bf16.mxu0 0
        %1470 = vmatpush1.bf16.msra.mxu0 0
        %1471 = vmatprep.subr.bf16.mxu0 0
        %1472 = vmatpush1.bf16.msra.mxu0 0
        %1473 = vmatprep.subr.bf16.mxu0 0
        %1474 = vmatpush1.bf16.msra.mxu0 0
        %1475 = vmatprep.subr.bf16.mxu0 0
        %1476 = vmatpush1.bf16.msra.mxu0 0
        %1477 = vmatprep.subr.bf16.mxu0 0
        %1478 = vmatpush1.bf16.msra.mxu0 0
        %1479 = vmatprep.subr.bf16.mxu0 0
        %1480 = vmatpush1.bf16.msra.mxu0 0
        %1481 = vmatprep.subr.bf16.mxu0 0
        %1482 = vmatpush1.bf16.msra.mxu0 0
        %1483 = vmatprep.subr.bf16.mxu0 0
        %1484 = vmatpush1.bf16.msra.mxu0 0
        %1485 = vmatprep.subr.bf16.mxu0 0
        %1486 = vmatpush1.bf16.msra.mxu0 0
        %1487 = vmatprep.mubr.bf16.mxu0 0
        %1488 = vmatmul.mubr.bf16.gmra.mrb[0].mxu0 %v1450
        %v1489 = vpop.f32.mrb[0].mxu0
        %v1490 = vadd.f32 0.0, %v1489
        %v1491 = vpop.f32.mrb[0].mxu0
        %v1492 = vpop.f32.mrb[0].mxu0
        %v1493 = vadd.f32 0.0, %v1492
        %v1494 = vpop.f32.mrb[0].mxu0
        %1495 = vmatprep.mubr.bf16.mxu0 0
        %1496 = vmatmul.mubr.bf16.gmra.mrb[0].mxu0 %v1453
        %v1497 = vpop.f32.mrb[0].mxu0
        %v1498 = vadd.f32 0.0, %v1497
        %v1499 = vpop.f32.mrb[0].mxu0
        %v1500 = vpop.f32.mrb[0].mxu0
        %v1501 = vadd.f32 0.0, %v1500
        %v1502 = vpop.f32.mrb[0].mxu0
        %1503 = vdwg.mxu0
        %1508 = vrot.lane.b32.xlu0 %v1106, 16
        %v1509 = vpop.permute.xlu0 %1508
        %1510 = vrot.lane.b32.xlu0 %v1109, 16
        %v1511 = vpop.permute.xlu0 %1510
        %1512 = vrot.lane.b32.xlu0 %v1114, 16
        %v1513 = vpop.permute.xlu0 %1512
        %1514 = vrot.lane.b32.xlu0 %v1117, 16
        %v1515 = vpop.permute.xlu0 %1514
        %1524 = vrot.lane.b32.xlu0 %v1298, 32
        %v1525 = vpop.permute.xlu0 %1524
        %1526 = vrot.lane.b32.xlu0 %v1301, 32
        %v1527 = vpop.permute.xlu0 %1526
        %1528 = vrot.lane.b32.xlu0 %v1306, 32
        %v1529 = vpop.permute.xlu0 %1528
        %1530 = vrot.lane.b32.xlu0 %v1309, 32
        %v1531 = vpop.permute.xlu0 %1530
        %1540 = vrot.lane.b32.xlu0 %v1490, 48
        %v1541 = vpop.permute.xlu0 %1540
        %1542 = vrot.lane.b32.xlu0 %v1493, 48
        %v1543 = vpop.permute.xlu0 %1542
        %1544 = vrot.lane.b32.xlu0 %v1498, 48
        %v1545 = vpop.permute.xlu0 %1544
        %1546 = vrot.lane.b32.xlu0 %v1501, 48
        %v1547 = vpop.permute.xlu0 %1546
        %v1552 = vsel %vm749, %v904, %v1509
        %v1553 = vsel %vm749, %v907, %v1511
        %v1554 = vsel %vm749, %v912, %v1513
        %v1555 = vsel %vm749, %v915, %v1515
        %vm1556 = vcmask 261120
        %v1557 = vsel %vm1556, %v1552, %v1525
        %v1558 = vsel %vm1556, %v1553, %v1527
        %v1559 = vsel %vm1556, %v1554, %v1529
        %v1560 = vsel %vm1556, %v1555, %v1531
        %vm1561 = vcmask 392192
        %v1562 = vsel %vm1561, %v1557, %v1541
        %v1563 = vsel %vm1561, %v1558, %v1543
        %v1564 = vsel %vm1561, %v1559, %v1545
        %v1565 = vsel %vm1561, %v1560, %v1547
        %v1566 = vpack.c.bf16 %v1563, %v1562
        %v1567 = vpack.c.bf16 %v1565, %v1564
        %s1568 = scalar_lea.vmem %s4, 96
        %v1569 = vld [vmem:[%s1568] sm:$0xf]
        %v1570 = vld [vmem:[%s1568 + $0x4] sm:$0xf]
        %v1571 = vld [vmem:[%s1568 + $0x8] sm:$0xf]
        %v1572 = vld [vmem:[%s1568 + $0xc] sm:$0xf]
        %v1573 = vld [vmem:[%s1568 + $0x10] sm:$0xf]
        %v1574 = vld [vmem:[%s1568 + $0x14] sm:$0xf]
        %v1575 = vld [vmem:[%s1568 + $0x18] sm:$0xf]
        %v1576 = vld [vmem:[%s1568 + $0x1c] sm:$0xf]
        %v1577 = vlaneseq
        %v1578 = vshrl.u32 %v1577, 7
        %v1579 = vsub.s32 3, %v1578
        %v1580 = vrot.slane %v344, %v1579
        %v1589 = vunpack.c.l.b16 %v1569
        %v1590 = vunpack.c.l.b16 %v1570
        %v1591 = vunpack.c.l.b16 %v1571
        %v1592 = vunpack.c.l.b16 %v1572
        %v1593 = vunpack.c.l.b16 %v1573
        %v1594 = vunpack.c.l.b16 %v1574
        %v1595 = vunpack.c.l.b16 %v1575
        %v1596 = vunpack.c.l.b16 %v1576
        %v1597 = vpack.c.b16 %v1590, %v1589
        %v1598 = vpack.c.b16 %v1592, %v1591
        %v1599 = vpack.c.b16 %v1594, %v1593
        %v1600 = vpack.c.b16 %v1596, %v1595
        %v1606 = vsel %vm421, %v1566, 0
        %v1609 = vsel %vm421, %v1567, 0
        %1611 = vmatprep.subr.bf16.mxu0 0
        %1612 = vmatpush1.bf16.msra.mxu0 %v1597
        %1613 = vmatprep.subr.bf16.mxu0 0
        %1614 = vmatpush1.bf16.msra.mxu0 %v1598
        %1615 = vmatprep.subr.bf16.mxu0 0
        %1616 = vmatpush1.bf16.msra.mxu0 %v1599
        %1617 = vmatprep.subr.bf16.mxu0 0
        %1618 = vmatpush1.bf16.msra.mxu0 %v1600
        %1619 = vmatprep.subr.bf16.mxu0 0
        %1620 = vmatpush1.bf16.msra.mxu0 0
        %1621 = vmatprep.subr.bf16.mxu0 0
        %1622 = vmatpush1.bf16.msra.mxu0 0
        %1623 = vmatprep.subr.bf16.mxu0 0
        %1624 = vmatpush1.bf16.msra.mxu0 0
        %1625 = vmatprep.subr.bf16.mxu0 0
        %1626 = vmatpush1.bf16.msra.mxu0 0
        %1627 = vmatprep.subr.bf16.mxu0 0
        %1628 = vmatpush1.bf16.msra.mxu0 0
        %1629 = vmatprep.subr.bf16.mxu0 0
        %1630 = vmatpush1.bf16.msra.mxu0 0
        %1631 = vmatprep.subr.bf16.mxu0 0
        %1632 = vmatpush1.bf16.msra.mxu0 0
        %1633 = vmatprep.subr.bf16.mxu0 0
        %1634 = vmatpush1.bf16.msra.mxu0 0
        %1635 = vmatprep.subr.bf16.mxu0 0
        %1636 = vmatpush1.bf16.msra.mxu0 0
        %1637 = vmatprep.subr.bf16.mxu0 0
        %1638 = vmatpush1.bf16.msra.mxu0 0
        %1639 = vmatprep.subr.bf16.mxu0 0
        %1640 = vmatpush1.bf16.msra.mxu0 0
        %1641 = vmatprep.subr.bf16.mxu0 0
        %1642 = vmatpush1.bf16.msra.mxu0 0
        %1643 = vmatprep.mubr.bf16.mxu0 0
        %1644 = vmatmul.mubr.bf16.gmra.mrb[0].mxu0 %v1606
        %v1645 = vpop.f32.mrb[0].mxu0
        %v1646 = vadd.f32 %v1580, %v1645
        %v1647 = vpop.f32.mrb[0].mxu0
        %v1648 = vpop.f32.mrb[0].mxu0
        %v1649 = vadd.f32 %v1580, %v1648
        %v1650 = vpop.f32.mrb[0].mxu0
        %1651 = vmatprep.mubr.bf16.mxu0 0
        %1652 = vmatmul.mubr.bf16.gmra.mrb[0].mxu0 %v1609
        %v1653 = vpop.f32.mrb[0].mxu0
        %v1654 = vadd.f32 %v1580, %v1653
        %v1655 = vpop.f32.mrb[0].mxu0
        %v1656 = vpop.f32.mrb[0].mxu0
        %v1657 = vadd.f32 %v1580, %v1656
        %v1658 = vpop.f32.mrb[0].mxu0
        %1659 = vdwg.mxu0
        %1660 = vst.msk [vmem:[%s315] sm:$0xff] %vm421, %v1646
        %1661 = vst.msk [vmem:[%s315 + $0x8] sm:$0xff] %vm421, %v1649
        %1662 = vst.msk [vmem:[%s315 + $0x10] sm:$0xff] %vm421, %v1654
        %1663 = vst.msk [vmem:[%s315 + $0x18] sm:$0xff] %vm421, %v1657
        %s1664 = sand.u32 %s190, 1
        %s1665 = scalar_lea.sflag [#allocation3], %s1664
        %s1666 = sand.u32 %s190, 1
        %s1667 = smul.addr %s1666, 32
        %s1668 = scalar_lea.vmem [#allocation2], %s1667
        // Predicated region
        $region45: #{multihead_attention.1} parent=43 // pred_check
          %p1669 = pneg %p200
        $region46: #{multihead_attention.1} parent=43 // pred_check_branch
          %1671 = sbr.rel (%p1669) target = $region48
        $region47: #{multihead_attention.1} parent=43 // pred_region
          %s1672 = smul.u32 4, %s25
          %s1674 = ssub.s32 512, 512
          %1675 = vsyncadd %s1665, %s1674
          %s1676 = smul.addr %s24, 8
          %s1677 = sadd.s32 %s1672, %s1676
          %s1678 = smul.addr %s1677, 128
          %s1679 = scalar_lea.hbm %s6, %s1678
          %s1680 = sshll.u32 %s1668, 4
          %s1681 = int_to_ptr.vmem [resolvable:$true] %s1680
          %1686 = dma.vmem_to_hbm [thread:$0]  %s1681, 512, %s1679, %s1665, 128, 128, 8
        $region48: #{multihead_attention.1} parent=43 // pred_fallthru
          _
      $region44: #{multihead_attention.1} parent=5 // pred_fallthru
        _
      %p1687 = scmp.le.s32.totalorder 2, %s15
      // Predicated region
      $region49: #{multihead_attention.1} parent=5 // pred_check
        %p1688 = pneg %p1687
      $region50: #{multihead_attention.1} parent=5 // pred_check_branch
        %1690 = sbr.rel (%p1688) target = $region52
      $region51: #{multihead_attention.1} parent=5 // pred_region
        %s1691 = ssub.s32 %s15, 2
        // Predicated region
        $region53: #{multihead_attention.1} parent=51 // pred_check
          %p1692 = pneg %p206
        $region54: #{multihead_attention.1} parent=51 // pred_check_branch
          %1694 = sbr.rel (%p1692) target = $region56
        $region55: #{multihead_attention.1} parent=51 // pred_region
          %s1695 = sand.u32 %s191, 1
          %s1696 = scalar_lea.sflag [#allocation3], %s1695
          %s1697 = sand.u32 %s191, 1
          %s1698 = smul.addr %s1697, 32
          %s1699 = scalar_lea.vmem [#allocation2], %s1698
          %1700 = dma.done %s1696, 512
        $region56: #{multihead_attention.1} parent=51 // pred_fallthru
          _
      $region52: #{multihead_attention.1} parent=5 // pred_fallthru
        _
    $region6: #{multihead_attention.1} parent=1 // loop_footer
      %s19 = sadd.s32 1, %s15
    $region7: #{multihead_attention.1} parent=1 // loop_footer_branch
      %14 = sbr.rel target = $region3
    $region8: #{multihead_attention.1} parent=1 // loop_exit
      _
    %1701 = vsyncpa [#allocation3], 1
    %s1702 = scalar_lea.sflag [#allocation3], 1
    %1703 = vsyncpa %s1702, 1

</llo_original>
